<compile_context>
chip_gen: v5e
topology: v5e:2x2
jax: 0.10.0
libtpu: 0.0.40
codegen_flags: <defaults>
</compile_context>

<pallas_src>
import functools

import jax
import jax.numpy as jnp
from jax import lax
from jax.experimental import pallas as pl
from jax.experimental.pallas import tpu as pltpu

LN_EPS = 1e-12          # BertLayerNorm eps
NEG_BIAS = -1e9         # additive attention bias for masked / other-block keys


def _r8(n):
    return ((n + 7) // 8) * 8


def _layernorm(x, gamma, beta, eps=LN_EPS):
    mean = jnp.mean(x, axis=-1, keepdims=True)
    var = jnp.mean(jnp.square(x - mean), axis=-1, keepdims=True)
    return (x - mean) * lax.rsqrt(var + eps) * gamma + beta


# ----------------------------------------------------------------------------
# Kernel
# ----------------------------------------------------------------------------
def senbert_kernel(act_ref, wblk_ref, ffn_ref, vec_ref, norm_ref, *maybe_loss,
                   batch, seq, hidden, inter, num_heads, num_layers,
                   compute_loss):
    B, S, H, I, NH, L = batch, seq, hidden, inter, num_heads, num_layers
    BS = B * S
    dh = H // NH
    NB = NH * BS                       # stacked (head, token) row count

    # ---- unpack the activation slab (static row / lane slices) --------------
    off_bias = _r8(BS)
    off_pool = off_bias + _r8(NB)
    off_tgt = off_pool + _r8(B)

    emb = act_ref[0:BS, 0:H]                       # (BS, H)
    bias = act_ref[off_bias:off_bias + NB, 0:NB]   # (NB, NB) block-diag bias
    pool = act_ref[off_pool:off_pool + B, 0:BS]    # (B, BS) pooling matrix

    # ---- embedding LayerNorm -------------------------------------------------
    x = _layernorm(emb, vec_ref[0:1, 0:H], vec_ref[0:1, H:2 * H])   # (BS, H)

    # ---- encoder layers (static unroll; L is tiny -- switch to fori_loop if
    #      num_layers grows beyond ~4) ----------------------------------------
    for li in range(L):
        rA = 1 + 3 * li
        rB = rA + 1
        rC = rA + 2
        bqkv = vec_ref[rA:rA + 1, 0:3 * H]         # (1, 3H), bq pre-scaled
        bo = vec_ref[rA:rA + 1, 3 * H:4 * H]       # (1, H)
        b1 = vec_ref[rB:rB + 1, 0:I]               # (1, I)
        b2 = vec_ref[rB:rB + 1, I:I + H]           # (1, H)
        g1 = vec_ref[rC:rC + 1, 0:H]
        be1 = vec_ref[rC:rC + 1, H:2 * H]
        g2 = vec_ref[rC:rC + 1, 2 * H:3 * H]
        be2 = vec_ref[rC:rC + 1, 3 * H:4 * H]

        wqkv = wblk_ref[li, :, 0:3 * H]            # (H, 3H)  [Wq*s | Wk | Wv]
        wo = wblk_ref[li, :, 3 * H:4 * H]          # (H, H)
        w1 = ffn_ref[li, 0:H, 0:I]                 # (H, I)
        w2 = ffn_ref[li, H:H + I, 0:H]             # (I, H)

        # ---- fused QKV projection: one MXU issue -----------------------------
        qkv = jnp.dot(x, wqkv, preferred_element_type=jnp.float32) + bqkv  # (BS, 3H)

        # head-stacked layout (NH*BS, dh): head h occupies rows h*BS..h*BS+BS-1
        q = jnp.concatenate(
            [qkv[:, h * dh:(h + 1) * dh] for h in range(NH)], axis=0)
        k = jnp.concatenate(
            [qkv[:, H + h * dh:H + (h + 1) * dh] for h in range(NH)], axis=0)
        v = jnp.concatenate(
            [qkv[:, 2 * H + h * dh:2 * H + (h + 1) * dh] for h in range(NH)], axis=0)

        # ---- all heads' scores in one matmul: Qs @ Ks^T ----------------------
        scores = lax.dot_general(q, k, (((1,), (1,)), ((), ())),
                                 preferred_element_type=jnp.float32) + bias
        m = jnp.max(scores, axis=-1, keepdims=True)
        p = jnp.exp(scores - m)
        p = p * pl.reciprocal(jnp.sum(p, axis=-1, keepdims=True), approx=True)
        ctx = jnp.dot(p, v, preferred_element_type=jnp.float32)   # (NB, dh)

        # ---- output projection fused with head concat: one matmul -----------
        ctx_flat = jnp.concatenate(
            [ctx[h * BS:(h + 1) * BS, :] for h in range(NH)], axis=1)  # (BS, H)
        attn_out = jnp.dot(ctx_flat, wo, preferred_element_type=jnp.float32) + bo
        h1 = _layernorm(x + attn_out, g1, be1)

        # ---- FFN (tanh-approx GELU, as in gelu_new) --------------------------
        f = jnp.dot(h1, w1, preferred_element_type=jnp.float32) + b1
        f = jax.nn.gelu(f, approximate=True)
        f = jnp.dot(f, w2, preferred_element_type=jnp.float32) + b2
        x = _layernorm(h1 + f, g2, be2)

    # ---- masked mean pooling (tiny matmul) + L2 normalize, exact divides ----
    pooled = jnp.dot(pool, x, preferred_element_type=jnp.float32)   # (B, H)
    denom = jnp.maximum(jnp.sum(pool, axis=-1, keepdims=True), 1e-9)
    pooled = pooled / denom
    l2 = jnp.sqrt(jnp.sum(pooled * pooled, axis=-1, keepdims=True))
    normed = pooled / jnp.maximum(l2, 1e-12)
    norm_ref[...] = normed

    if compute_loss:
        (loss_ref,) = maybe_loss
        target = act_ref[off_tgt:off_tgt + B, 0:H]
        diff = normed - target
        sq = jnp.sum(diff * diff, axis=-1, keepdims=True)           # (B, 1)
        loss_ref[...] = jnp.sum(sq, axis=0, keepdims=True) * (1.0 / (B * H))


# ----------------------------------------------------------------------------
# Host-side parameter packing (done once per call, outside the kernel)
# ----------------------------------------------------------------------------
def _pack_params(params, cfg):
    H = cfg["hidden_size"]
    I = cfg["intermediate_size"]
    NH = cfg["num_heads"]
    dh = H // NH
    scale = 1.0 / (dh ** 0.5)

    WV = max(4 * H, I + H)
    WF = max(H, I)

    def row(parts):
        r = jnp.concatenate(parts, axis=1)
        return jnp.pad(r, ((0, 0), (0, WV - r.shape[1])))

    wblk, ffn, vec_rows = [], [], [row([params["emb_ln_g"], params["emb_ln_b"]])]
    for lp in params["layers"]:
        wblk.append(jnp.concatenate(
            [lp["wq"] * scale, lp["wk"], lp["wv"], lp["wo"]], axis=1))   # (H, 4H)
        w1p = jnp.pad(lp["w1"], ((0, 0), (0, WF - I)))                   # (H, WF)
        w2p = jnp.pad(lp["w2"], ((0, 0), (0, WF - H)))                   # (I, WF)
        ffn.append(jnp.concatenate([w1p, w2p], axis=0))                  # (H+I, WF)
        vec_rows.append(row([lp["bq"] * scale, lp["bk"], lp["bv"], lp["bo"]]))
        vec_rows.append(row([lp["b1"], lp["b2"]]))
        vec_rows.append(row([lp["ln1_g"], lp["ln1_b"], lp["ln2_g"], lp["ln2_b"]]))

    return (jnp.stack(wblk),                       # (L, H, 4H)
            jnp.stack(ffn),                        # (L, H+I, WF)
            jnp.concatenate(vec_rows, axis=0))     # (1+3L, WV)


# ----------------------------------------------------------------------------
# Forward wrapper
# ----------------------------------------------------------------------------
def senbert_forward(params, input_ids, attention_mask, target, cfg):
    B, S = input_ids.shape
    H = cfg["hidden_size"]
    I = cfg["intermediate_size"]
    NH = cfg["num_heads"]
    L = cfg["num_layers"]
    BS = B * S
    NB = NH * BS
    dh = H // NH

    mask_f = attention_mask.astype(jnp.float32)                     # (B, S)

    # Host-side glue: embedding-table gather + mask / pooling-matrix setup
    # (same role as HF BERT's embedding lookup & get_extended_attention_mask).
    # TODO(synk): the vocab gather itself stays in XLA; a data-dependent gather
    # has no efficient grid-less Pallas equivalent at this size.
    emb = (params["word_emb"][input_ids]
           + params["pos_emb"][:S][None, :, :]
           + params["type_emb"][0][None, None, :]).reshape(BS, H).astype(jnp.float32)

    batch_id = jnp.repeat(jnp.arange(B), S)                         # (BS,)
    allowed = ((batch_id[:, None] == batch_id[None, :])
               & (mask_f.reshape(BS)[None, :] > 0.5))               # (BS, BS)
    head_id = jnp.repeat(jnp.arange(NH), BS)                        # (NB,)
    allowed_big = ((head_id[:, None] == head_id[None, :])
                   & jnp.tile(allowed, (NH, NH)))                   # (NB, NB)
    bias_big = jnp.where(allowed_big, 0.0, NEG_BIAS).astype(jnp.float32)

    # pool_mat[b, b*S+s] = mask[b, s]; pooling becomes a (B,BS)@(BS,H) matmul.
    pool_mat = (jnp.eye(B, dtype=jnp.float32)[:, :, None]
                * mask_f[None, :, :]).reshape(B, BS)

    compute_loss = target is not None
    WA = max(H, NB, BS)

    def pad_block(a):   # pad rows to a multiple of 8, lanes to WA
        return jnp.pad(a.astype(jnp.float32),
                       ((0, _r8(a.shape[0]) - a.shape[0]), (0, WA - a.shape[1])))

    pieces = [pad_block(emb), pad_block(bias_big), pad_block(pool_mat)]
    if compute_loss:
        pieces.append(pad_block(target))
    act = jnp.concatenate(pieces, axis=0)

    wblk, ffn, vec = _pack_params(params, cfg)
    args = (act, wblk, ffn, vec)

    kernel = functools.partial(
        senbert_kernel, batch=B, seq=S, hidden=H, inter=I,
        num_heads=NH, num_layers=L, compute_loss=compute_loss)
    vmem = pl.BlockSpec(memory_space=pltpu.MemorySpace.VMEM)

    flops_layer = (2 * BS * H * 3 * H          # qkv projection
                   + 2 * NB * NB * dh * 2      # scores + ctx
                   + 2 * BS * H * H            # output projection
                   + 2 * BS * H * I * 2)       # FFN
    cost = pl.CostEstimate(
        flops=int(L * flops_layer + 2 * B * BS * H),
        transcendentals=int(L * (NB * NB + BS * I)),
        bytes_accessed=int(sum(a.size * a.dtype.itemsize for a in args)
                           + (B * H + 1) * 4))

    if compute_loss:
        norm_out, loss2d = pl.pallas_call(
            kernel,
            in_specs=[vmem] * len(args),
            out_specs=(vmem, vmem),
            out_shape=(jax.ShapeDtypeStruct((B, H), jnp.float32),
                       jax.ShapeDtypeStruct((1, 1), jnp.float32)),
            cost_estimate=cost,
        )(*args)
        return norm_out, loss2d[0, 0]

    norm_out = pl.pallas_call(
        kernel,
        in_specs=[vmem] * len(args),
        out_specs=vmem,
        out_shape=jax.ShapeDtypeStruct((B, H), jnp.float32),
        cost_estimate=cost,
    )(*args)
    return norm_out, None


# ----------------------------------------------------------------------------
# Deterministic synthetic parameters
# ----------------------------------------------------------------------------
def init_params(key, cfg):
    H, I = cfg["hidden_size"], cfg["intermediate_size"]
    V, P = cfg["vocab_size"], cfg["max_position"]
    keys = jax.random.split(key, 4 + cfg["num_layers"])

    def nrm(k, shape):
        return 0.02 * jax.random.normal(k, shape, dtype=jnp.float32)

    params = {
        "word_emb": nrm(keys[0], (V, H)),
        "pos_emb": nrm(keys[1], (P, H)),
        "type_emb": nrm(keys[2], (2, H)),
        "emb_ln_g": jnp.ones((1, H), jnp.float32),
        "emb_ln_b": jnp.zeros((1, H), jnp.float32),
        "layers": [],
    }
    for li in range(cfg["num_layers"]):
        lk = jax.random.split(keys[4 + li], 6)
        params["layers"].append({
            "wq": nrm(lk[0], (H, H)), "bq": jnp.zeros((1, H), jnp.float32),
            "wk": nrm(lk[1], (H, H)), "bk": jnp.zeros((1, H), jnp.float32),
            "wv": nrm(lk[2], (H, H)), "bv": jnp.zeros((1, H), jnp.float32),
            "wo": nrm(lk[3], (H, H)), "bo": jnp.zeros((1, H), jnp.float32),
            "ln1_g": jnp.ones((1, H), jnp.float32),
            "ln1_b": jnp.zeros((1, H), jnp.float32),
            "w1": nrm(lk[4], (H, I)), "b1": jnp.zeros((1, I), jnp.float32),
            "w2": nrm(lk[5], (I, H)), "b2": jnp.zeros((1, H), jnp.float32),
            "ln2_g": jnp.ones((1, H), jnp.float32),
            "ln2_b": jnp.zeros((1, H), jnp.float32),
        })
    return params


# ----------------------------------------------------------------------------
if __name__ == "__main__":
    cfg = dict(vocab_size=64, hidden_size=32, num_layers=2, num_heads=4,
               intermediate_size=64, max_position=16)
    B, S = 2, 8

    root = jax.random.PRNGKey(0)
    k_param, k_ids, k_tgt = jax.random.split(root, 3)
    params = init_params(k_param, cfg)

    input_ids = jax.random.randint(k_ids, (B, S), 0, cfg["vocab_size"],
                                   dtype=jnp.int32)
    attention_mask = jnp.array([[1, 1, 1, 1, 1, 1, 0, 0],
                                [1, 1, 1, 1, 0, 0, 0, 0]], dtype=jnp.int32)
    target = jax.random.normal(k_tgt, (B, cfg["hidden_size"]), dtype=jnp.float32)

    # with target -> (norm_output, mse_loss)
    norm_out, loss = senbert_forward(params, input_ids, attention_mask, target, cfg)
    jax.block_until_ready((norm_out, loss))
    assert norm_out.shape == (B, cfg["hidden_size"])
    assert jnp.all(jnp.isfinite(norm_out)) and jnp.isfinite(loss)
    # L2-normalized rows must have unit norm
    assert jnp.allclose(jnp.linalg.norm(norm_out, axis=-1), 1.0, atol=1e-4)

    # without target -> (norm_output, None), MSE statically skipped
    norm_only, no_loss = senbert_forward(params, input_ids, attention_mask, None, cfg)
    jax.block_until_ready(norm_only)
    assert no_loss is None
    assert norm_only.shape == (B, cfg["hidden_size"])
    assert jnp.all(jnp.isfinite(norm_only))

    print("KERNEL_OK")
</pallas_src>

<mosaic_0001>
module attributes {stable_mosaic.version = 11 : i64} {
  func.func @senbert_kernel(%arg0: memref<96x64xf32, #tpu.memory_space<vmem>>, %arg1: memref<2x32x128xf32, #tpu.memory_space<vmem>>, %arg2: memref<2x96x64xf32, #tpu.memory_space<vmem>>, %arg3: memref<7x128xf32, #tpu.memory_space<vmem>>, %arg4: memref<2x32xf32, #tpu.memory_space<vmem>>, %arg5: memref<1x1xf32, #tpu.memory_space<vmem>>) attributes {dimension_semantics = [], scalar_prefetch = 0 : i64, scratch_operands = 0 : i64, tpu.core_type = #tpu.core_type<tc>} {
    %c0 = arith.constant 0 : index
    %c0_0 = arith.constant 0 : index
    %0 = vector.load %arg0[%c0, %c0_0] : memref<96x64xf32, #tpu.memory_space<vmem>>, vector<16x32xf32>
    %c16 = arith.constant 16 : index
    %c0_1 = arith.constant 0 : index
    %1 = vector.load %arg0[%c16, %c0_1] : memref<96x64xf32, #tpu.memory_space<vmem>>, vector<64x64xf32>
    %c80 = arith.constant 80 : index
    %c0_2 = arith.constant 0 : index
    %2 = vector.load %arg0[%c80, %c0_2] : memref<96x64xf32, #tpu.memory_space<vmem>>, vector<2x16xf32>
    %c0_3 = arith.constant 0 : index
    %c0_4 = arith.constant 0 : index
    %3 = vector.load %arg3[%c0_3, %c0_4] : memref<7x128xf32, #tpu.memory_space<vmem>>, vector<1x32xf32>
    %c0_5 = arith.constant 0 : index
    %c32 = arith.constant 32 : index
    %4 = vector.load %arg3[%c0_5, %c32] : memref<7x128xf32, #tpu.memory_space<vmem>>, vector<1x32xf32>
    %cst = arith.constant dense<0.000000e+00> : vector<16xf32>
    %5 = vector.multi_reduction <add>, %0, %cst [1] : vector<16x32xf32> to vector<16xf32>
    %6 = vector.shape_cast %5 : vector<16xf32> to vector<16x1xf32>
    %cst_6 = arith.constant 3.200000e+01 : f32
    %7 = vector.broadcast %cst_6 : f32 to vector<16x1xf32>
    %8 = arith.divf %6, %7 : vector<16x1xf32>
    %9 = vector.broadcast %8 : vector<16x1xf32> to vector<16x32xf32>
    %10 = arith.subf %0, %9 : vector<16x32xf32>
    %11 = arith.mulf %10, %10 : vector<16x32xf32>
    %cst_7 = arith.constant dense<0.000000e+00> : vector<16xf32>
    %12 = vector.multi_reduction <add>, %11, %cst_7 [1] : vector<16x32xf32> to vector<16xf32>
    %13 = vector.shape_cast %12 : vector<16xf32> to vector<16x1xf32>
    %cst_8 = arith.constant 3.200000e+01 : f32
    %14 = vector.broadcast %cst_8 : f32 to vector<16x1xf32>
    %15 = arith.divf %13, %14 : vector<16x1xf32>
    %16 = vector.broadcast %8 : vector<16x1xf32> to vector<16x32xf32>
    %17 = arith.subf %0, %16 : vector<16x32xf32>
    %cst_9 = arith.constant 9.99999996E-13 : f32
    %18 = vector.broadcast %cst_9 : f32 to vector<16x1xf32>
    %19 = arith.addf %15, %18 : vector<16x1xf32>
    %20 = math.rsqrt %19 : vector<16x1xf32>
    %21 = vector.broadcast %20 : vector<16x1xf32> to vector<16x32xf32>
    %22 = arith.mulf %17, %21 : vector<16x32xf32>
    %23 = vector.broadcast %3 : vector<1x32xf32> to vector<16x32xf32>
    %24 = arith.mulf %22, %23 : vector<16x32xf32>
    %25 = vector.broadcast %4 : vector<1x32xf32> to vector<16x32xf32>
    %26 = arith.addf %24, %25 : vector<16x32xf32>
    %c1 = arith.constant 1 : index
    %c0_10 = arith.constant 0 : index
    %27 = vector.load %arg3[%c1, %c0_10] : memref<7x128xf32, #tpu.memory_space<vmem>>, vector<1x96xf32>
    %c1_11 = arith.constant 1 : index
    %c96 = arith.constant 96 : index
    %28 = vector.load %arg3[%c1_11, %c96] : memref<7x128xf32, #tpu.memory_space<vmem>>, vector<1x32xf32>
    %c2 = arith.constant 2 : index
    %c0_12 = arith.constant 0 : index
    %29 = vector.load %arg3[%c2, %c0_12] : memref<7x128xf32, #tpu.memory_space<vmem>>, vector<1x64xf32>
    %c2_13 = arith.constant 2 : index
    %c64 = arith.constant 64 : index
    %30 = vector.load %arg3[%c2_13, %c64] : memref<7x128xf32, #tpu.memory_space<vmem>>, vector<1x32xf32>
    %c3 = arith.constant 3 : index
    %c0_14 = arith.constant 0 : index
    %31 = vector.load %arg3[%c3, %c0_14] : memref<7x128xf32, #tpu.memory_space<vmem>>, vector<1x32xf32>
    %c3_15 = arith.constant 3 : index
    %c32_16 = arith.constant 32 : index
    %32 = vector.load %arg3[%c3_15, %c32_16] : memref<7x128xf32, #tpu.memory_space<vmem>>, vector<1x32xf32>
    %c3_17 = arith.constant 3 : index
    %c64_18 = arith.constant 64 : index
    %33 = vector.load %arg3[%c3_17, %c64_18] : memref<7x128xf32, #tpu.memory_space<vmem>>, vector<1x32xf32>
    %c3_19 = arith.constant 3 : index
    %c96_20 = arith.constant 96 : index
    %34 = vector.load %arg3[%c3_19, %c96_20] : memref<7x128xf32, #tpu.memory_space<vmem>>, vector<1x32xf32>
    %c0_21 = arith.constant 0 : index
    %c0_22 = arith.constant 0 : index
    %c0_23 = arith.constant 0 : index
    %35 = vector.load %arg1[%c0_21, %c0_22, %c0_23] : memref<2x32x128xf32, #tpu.memory_space<vmem>>, vector<1x32x96xf32>
    %36 = vector.shape_cast %35 : vector<1x32x96xf32> to vector<32x96xf32>
    %c0_24 = arith.constant 0 : index
    %c0_25 = arith.constant 0 : index
    %c96_26 = arith.constant 96 : index
    %37 = vector.load %arg1[%c0_24, %c0_25, %c96_26] : memref<2x32x128xf32, #tpu.memory_space<vmem>>, vector<1x32x32xf32>
    %38 = vector.shape_cast %37 : vector<1x32x32xf32> to vector<32x32xf32>
    %c0_27 = arith.constant 0 : index
    %c0_28 = arith.constant 0 : index
    %c0_29 = arith.constant 0 : index
    %39 = vector.load %arg2[%c0_27, %c0_28, %c0_29] : memref<2x96x64xf32, #tpu.memory_space<vmem>>, vector<1x32x64xf32>
    %40 = vector.shape_cast %39 : vector<1x32x64xf32> to vector<32x64xf32>
    %c0_30 = arith.constant 0 : index
    %c32_31 = arith.constant 32 : index
    %c0_32 = arith.constant 0 : index
    %41 = vector.load %arg2[%c0_30, %c32_31, %c0_32] : memref<2x96x64xf32, #tpu.memory_space<vmem>>, vector<1x64x32xf32>
    %42 = vector.shape_cast %41 : vector<1x64x32xf32> to vector<64x32xf32>
    %cst_33 = arith.constant dense<0.000000e+00> : vector<16x96xf32>
    %43 = tpu.matmul %26, %36, %cst_33 {dimension_numbers = #tpu.dot_dimension_numbers<[1], [0], [0], [1], [0, 0, 1, 1], [], []>} : vector<16x32xf32>, vector<32x96xf32>, vector<16x96xf32> -> vector<16x96xf32>
    %44 = vector.broadcast %27 : vector<1x96xf32> to vector<16x96xf32>
    %45 = arith.addf %43, %44 : vector<16x96xf32>
    %46 = vector.extract_strided_slice %45 {offsets = [0, 0], sizes = [16, 8], strides = [1, 1]} : vector<16x96xf32> to vector<16x8xf32>
    %47 = vector.extract_strided_slice %45 {offsets = [0, 8], sizes = [16, 8], strides = [1, 1]} : vector<16x96xf32> to vector<16x8xf32>
    %48 = vector.extract_strided_slice %45 {offsets = [0, 16], sizes = [16, 8], strides = [1, 1]} : vector<16x96xf32> to vector<16x8xf32>
    %49 = vector.extract_strided_slice %45 {offsets = [0, 24], sizes = [16, 8], strides = [1, 1]} : vector<16x96xf32> to vector<16x8xf32>
    %50 = tpu.concatenate %46, %47, %48, %49 in 0 : vector<16x8xf32>, vector<16x8xf32>, vector<16x8xf32>, vector<16x8xf32> -> vector<64x8xf32>
    %51 = vector.extract_strided_slice %45 {offsets = [0, 32], sizes = [16, 8], strides = [1, 1]} : vector<16x96xf32> to vector<16x8xf32>
    %52 = vector.extract_strided_slice %45 {offsets = [0, 40], sizes = [16, 8], strides = [1, 1]} : vector<16x96xf32> to vector<16x8xf32>
    %53 = vector.extract_strided_slice %45 {offsets = [0, 48], sizes = [16, 8], strides = [1, 1]} : vector<16x96xf32> to vector<16x8xf32>
    %54 = vector.extract_strided_slice %45 {offsets = [0, 56], sizes = [16, 8], strides = [1, 1]} : vector<16x96xf32> to vector<16x8xf32>
    %55 = tpu.concatenate %51, %52, %53, %54 in 0 : vector<16x8xf32>, vector<16x8xf32>, vector<16x8xf32>, vector<16x8xf32> -> vector<64x8xf32>
    %56 = vector.extract_strided_slice %45 {offsets = [0, 64], sizes = [16, 8], strides = [1, 1]} : vector<16x96xf32> to vector<16x8xf32>
    %57 = vector.extract_strided_slice %45 {offsets = [0, 72], sizes = [16, 8], strides = [1, 1]} : vector<16x96xf32> to vector<16x8xf32>
    %58 = vector.extract_strided_slice %45 {offsets = [0, 80], sizes = [16, 8], strides = [1, 1]} : vector<16x96xf32> to vector<16x8xf32>
    %59 = vector.extract_strided_slice %45 {offsets = [0, 88], sizes = [16, 8], strides = [1, 1]} : vector<16x96xf32> to vector<16x8xf32>
    %60 = tpu.concatenate %56, %57, %58, %59 in 0 : vector<16x8xf32>, vector<16x8xf32>, vector<16x8xf32>, vector<16x8xf32> -> vector<64x8xf32>
    %cst_34 = arith.constant dense<0.000000e+00> : vector<64x64xf32>
    %61 = tpu.matmul %50, %55, %cst_34 {dimension_numbers = #tpu.dot_dimension_numbers<[1], [1], [0], [0], [0, 0, 1, 0], [], []>} : vector<64x8xf32>, vector<64x8xf32>, vector<64x64xf32> -> vector<64x64xf32>
    %62 = arith.addf %61, %1 : vector<64x64xf32>
    %cst_35 = arith.constant dense<0xFF800000> : vector<64xf32>
    %63 = vector.multi_reduction <maximumf>, %62, %cst_35 [1] : vector<64x64xf32> to vector<64xf32>
    %64 = vector.shape_cast %63 : vector<64xf32> to vector<64x1xf32>
    %65 = vector.broadcast %64 : vector<64x1xf32> to vector<64x64xf32>
    %66 = arith.subf %62, %65 : vector<64x64xf32>
    %67 = math.exp %66 : vector<64x64xf32>
    %cst_36 = arith.constant dense<0.000000e+00> : vector<64xf32>
    %68 = vector.multi_reduction <add>, %67, %cst_36 [1] : vector<64x64xf32> to vector<64xf32>
    %69 = vector.shape_cast %68 : vector<64xf32> to vector<64x1xf32>
    %70 = tpu.reciprocal %69 {approx = true} : vector<64x1xf32> -> vector<64x1xf32>
    %71 = vector.broadcast %70 : vector<64x1xf32> to vector<64x64xf32>
    %72 = arith.mulf %67, %71 : vector<64x64xf32>
    %cst_37 = arith.constant dense<0.000000e+00> : vector<64x8xf32>
    %73 = tpu.matmul %72, %60, %cst_37 {dimension_numbers = #tpu.dot_dimension_numbers<[1], [0], [0], [1], [0, 0, 1, 1], [], []>} : vector<64x64xf32>, vector<64x8xf32>, vector<64x8xf32> -> vector<64x8xf32>
    %74 = vector.extract_strided_slice %73 {offsets = [0, 0], sizes = [16, 8], strides = [1, 1]} : vector<64x8xf32> to vector<16x8xf32>
    %75 = vector.extract_strided_slice %73 {offsets = [16, 0], sizes = [16, 8], strides = [1, 1]} : vector<64x8xf32> to vector<16x8xf32>
    %76 = vector.extract_strided_slice %73 {offsets = [32, 0], sizes = [16, 8], strides = [1, 1]} : vector<64x8xf32> to vector<16x8xf32>
    %77 = vector.extract_strided_slice %73 {offsets = [48, 0], sizes = [16, 8], strides = [1, 1]} : vector<64x8xf32> to vector<16x8xf32>
    %78 = tpu.concatenate %74, %75, %76, %77 in 1 : vector<16x8xf32>, vector<16x8xf32>, vector<16x8xf32>, vector<16x8xf32> -> vector<16x32xf32>
    %cst_38 = arith.constant dense<0.000000e+00> : vector<16x32xf32>
    %79 = tpu.matmul %78, %38, %cst_38 {dimension_numbers = #tpu.dot_dimension_numbers<[1], [0], [0], [1], [0, 0, 1, 1], [], []>} : vector<16x32xf32>, vector<32x32xf32>, vector<16x32xf32> -> vector<16x32xf32>
    %80 = vector.broadcast %28 : vector<1x32xf32> to vector<16x32xf32>
    %81 = arith.addf %79, %80 : vector<16x32xf32>
    %82 = arith.addf %26, %81 : vector<16x32xf32>
    %cst_39 = arith.constant dense<0.000000e+00> : vector<16xf32>
    %83 = vector.multi_reduction <add>, %82, %cst_39 [1] : vector<16x32xf32> to vector<16xf32>
    %84 = vector.shape_cast %83 : vector<16xf32> to vector<16x1xf32>
    %cst_40 = arith.constant 3.200000e+01 : f32
    %85 = vector.broadcast %cst_40 : f32 to vector<16x1xf32>
    %86 = arith.divf %84, %85 : vector<16x1xf32>
    %87 = vector.broadcast %86 : vector<16x1xf32> to vector<16x32xf32>
    %88 = arith.subf %82, %87 : vector<16x32xf32>
    %89 = arith.mulf %88, %88 : vector<16x32xf32>
    %cst_41 = arith.constant dense<0.000000e+00> : vector<16xf32>
    %90 = vector.multi_reduction <add>, %89, %cst_41 [1] : vector<16x32xf32> to vector<16xf32>
    %91 = vector.shape_cast %90 : vector<16xf32> to vector<16x1xf32>
    %cst_42 = arith.constant 3.200000e+01 : f32
    %92 = vector.broadcast %cst_42 : f32 to vector<16x1xf32>
    %93 = arith.divf %91, %92 : vector<16x1xf32>
    %94 = vector.broadcast %86 : vector<16x1xf32> to vector<16x32xf32>
    %95 = arith.subf %82, %94 : vector<16x32xf32>
    %cst_43 = arith.constant 9.99999996E-13 : f32
    %96 = vector.broadcast %cst_43 : f32 to vector<16x1xf32>
    %97 = arith.addf %93, %96 : vector<16x1xf32>
    %98 = math.rsqrt %97 : vector<16x1xf32>
    %99 = vector.broadcast %98 : vector<16x1xf32> to vector<16x32xf32>
    %100 = arith.mulf %95, %99 : vector<16x32xf32>
    %101 = vector.broadcast %31 : vector<1x32xf32> to vector<16x32xf32>
    %102 = arith.mulf %100, %101 : vector<16x32xf32>
    %103 = vector.broadcast %32 : vector<1x32xf32> to vector<16x32xf32>
    %104 = arith.addf %102, %103 : vector<16x32xf32>
    %cst_44 = arith.constant dense<0.000000e+00> : vector<16x64xf32>
    %105 = tpu.matmul %104, %40, %cst_44 {dimension_numbers = #tpu.dot_dimension_numbers<[1], [0], [0], [1], [0, 0, 1, 1], [], []>} : vector<16x32xf32>, vector<32x64xf32>, vector<16x64xf32> -> vector<16x64xf32>
    %106 = vector.broadcast %29 : vector<1x64xf32> to vector<16x64xf32>
    %107 = arith.addf %105, %106 : vector<16x64xf32>
    %108 = arith.mulf %107, %107 : vector<16x64xf32>
    %109 = arith.mulf %107, %108 : vector<16x64xf32>
    %cst_45 = arith.constant 4.471500e-02 : f32
    %110 = vector.broadcast %cst_45 : f32 to vector<16x64xf32>
    %111 = arith.mulf %110, %109 : vector<16x64xf32>
    %112 = arith.addf %107, %111 : vector<16x64xf32>
    %cst_46 = arith.constant 0.797884583 : f32
    %113 = vector.broadcast %cst_46 : f32 to vector<16x64xf32>
    %114 = arith.mulf %113, %112 : vector<16x64xf32>
    %115 = math.tanh %114 : vector<16x64xf32>
    %cst_47 = arith.constant 1.000000e+00 : f32
    %116 = vector.broadcast %cst_47 : f32 to vector<16x64xf32>
    %117 = arith.addf %116, %115 : vector<16x64xf32>
    %cst_48 = arith.constant 5.000000e-01 : f32
    %118 = vector.broadcast %cst_48 : f32 to vector<16x64xf32>
    %119 = arith.mulf %118, %117 : vector<16x64xf32>
    %120 = arith.mulf %107, %119 : vector<16x64xf32>
    %cst_49 = arith.constant dense<0.000000e+00> : vector<16x32xf32>
    %121 = tpu.matmul %120, %42, %cst_49 {dimension_numbers = #tpu.dot_dimension_numbers<[1], [0], [0], [1], [0, 0, 1, 1], [], []>} : vector<16x64xf32>, vector<64x32xf32>, vector<16x32xf32> -> vector<16x32xf32>
    %122 = vector.broadcast %30 : vector<1x32xf32> to vector<16x32xf32>
    %123 = arith.addf %121, %122 : vector<16x32xf32>
    %124 = arith.addf %104, %123 : vector<16x32xf32>
    %cst_50 = arith.constant dense<0.000000e+00> : vector<16xf32>
    %125 = vector.multi_reduction <add>, %124, %cst_50 [1] : vector<16x32xf32> to vector<16xf32>
    %126 = vector.shape_cast %125 : vector<16xf32> to vector<16x1xf32>
    %cst_51 = arith.constant 3.200000e+01 : f32
    %127 = vector.broadcast %cst_51 : f32 to vector<16x1xf32>
    %128 = arith.divf %126, %127 : vector<16x1xf32>
    %129 = vector.broadcast %128 : vector<16x1xf32> to vector<16x32xf32>
    %130 = arith.subf %124, %129 : vector<16x32xf32>
    %131 = arith.mulf %130, %130 : vector<16x32xf32>
    %cst_52 = arith.constant dense<0.000000e+00> : vector<16xf32>
    %132 = vector.multi_reduction <add>, %131, %cst_52 [1] : vector<16x32xf32> to vector<16xf32>
    %133 = vector.shape_cast %132 : vector<16xf32> to vector<16x1xf32>
    %cst_53 = arith.constant 3.200000e+01 : f32
    %134 = vector.broadcast %cst_53 : f32 to vector<16x1xf32>
    %135 = arith.divf %133, %134 : vector<16x1xf32>
    %136 = vector.broadcast %128 : vector<16x1xf32> to vector<16x32xf32>
    %137 = arith.subf %124, %136 : vector<16x32xf32>
    %cst_54 = arith.constant 9.99999996E-13 : f32
    %138 = vector.broadcast %cst_54 : f32 to vector<16x1xf32>
    %139 = arith.addf %135, %138 : vector<16x1xf32>
    %140 = math.rsqrt %139 : vector<16x1xf32>
    %141 = vector.broadcast %140 : vector<16x1xf32> to vector<16x32xf32>
    %142 = arith.mulf %137, %141 : vector<16x32xf32>
    %143 = vector.broadcast %33 : vector<1x32xf32> to vector<16x32xf32>
    %144 = arith.mulf %142, %143 : vector<16x32xf32>
    %145 = vector.broadcast %34 : vector<1x32xf32> to vector<16x32xf32>
    %146 = arith.addf %144, %145 : vector<16x32xf32>
    %c4 = arith.constant 4 : index
    %c0_55 = arith.constant 0 : index
    %147 = vector.load %arg3[%c4, %c0_55] : memref<7x128xf32, #tpu.memory_space<vmem>>, vector<1x96xf32>
    %c4_56 = arith.constant 4 : index
    %c96_57 = arith.constant 96 : index
    %148 = vector.load %arg3[%c4_56, %c96_57] : memref<7x128xf32, #tpu.memory_space<vmem>>, vector<1x32xf32>
    %c5 = arith.constant 5 : index
    %c0_58 = arith.constant 0 : index
    %149 = vector.load %arg3[%c5, %c0_58] : memref<7x128xf32, #tpu.memory_space<vmem>>, vector<1x64xf32>
    %c5_59 = arith.constant 5 : index
    %c64_60 = arith.constant 64 : index
    %150 = vector.load %arg3[%c5_59, %c64_60] : memref<7x128xf32, #tpu.memory_space<vmem>>, vector<1x32xf32>
    %c6 = arith.constant 6 : index
    %c0_61 = arith.constant 0 : index
    %151 = vector.load %arg3[%c6, %c0_61] : memref<7x128xf32, #tpu.memory_space<vmem>>, vector<1x32xf32>
    %c6_62 = arith.constant 6 : index
    %c32_63 = arith.constant 32 : index
    %152 = vector.load %arg3[%c6_62, %c32_63] : memref<7x128xf32, #tpu.memory_space<vmem>>, vector<1x32xf32>
    %c6_64 = arith.constant 6 : index
    %c64_65 = arith.constant 64 : index
    %153 = vector.load %arg3[%c6_64, %c64_65] : memref<7x128xf32, #tpu.memory_space<vmem>>, vector<1x32xf32>
    %c6_66 = arith.constant 6 : index
    %c96_67 = arith.constant 96 : index
    %154 = vector.load %arg3[%c6_66, %c96_67] : memref<7x128xf32, #tpu.memory_space<vmem>>, vector<1x32xf32>
    %c1_68 = arith.constant 1 : index
    %c0_69 = arith.constant 0 : index
    %c0_70 = arith.constant 0 : index
    %155 = vector.load %arg1[%c1_68, %c0_69, %c0_70] : memref<2x32x128xf32, #tpu.memory_space<vmem>>, vector<1x32x96xf32>
    %156 = vector.shape_cast %155 : vector<1x32x96xf32> to vector<32x96xf32>
    %c1_71 = arith.constant 1 : index
    %c0_72 = arith.constant 0 : index
    %c96_73 = arith.constant 96 : index
    %157 = vector.load %arg1[%c1_71, %c0_72, %c96_73] : memref<2x32x128xf32, #tpu.memory_space<vmem>>, vector<1x32x32xf32>
    %158 = vector.shape_cast %157 : vector<1x32x32xf32> to vector<32x32xf32>
    %c1_74 = arith.constant 1 : index
    %c0_75 = arith.constant 0 : index
    %c0_76 = arith.constant 0 : index
    %159 = vector.load %arg2[%c1_74, %c0_75, %c0_76] : memref<2x96x64xf32, #tpu.memory_space<vmem>>, vector<1x32x64xf32>
    %160 = vector.shape_cast %159 : vector<1x32x64xf32> to vector<32x64xf32>
    %c1_77 = arith.constant 1 : index
    %c32_78 = arith.constant 32 : index
    %c0_79 = arith.constant 0 : index
    %161 = vector.load %arg2[%c1_77, %c32_78, %c0_79] : memref<2x96x64xf32, #tpu.memory_space<vmem>>, vector<1x64x32xf32>
    %162 = vector.shape_cast %161 : vector<1x64x32xf32> to vector<64x32xf32>
    %cst_80 = arith.constant dense<0.000000e+00> : vector<16x96xf32>
    %163 = tpu.matmul %146, %156, %cst_80 {dimension_numbers = #tpu.dot_dimension_numbers<[1], [0], [0], [1], [0, 0, 1, 1], [], []>} : vector<16x32xf32>, vector<32x96xf32>, vector<16x96xf32> -> vector<16x96xf32>
    %164 = vector.broadcast %147 : vector<1x96xf32> to vector<16x96xf32>
    %165 = arith.addf %163, %164 : vector<16x96xf32>
    %166 = vector.extract_strided_slice %165 {offsets = [0, 0], sizes = [16, 8], strides = [1, 1]} : vector<16x96xf32> to vector<16x8xf32>
    %167 = vector.extract_strided_slice %165 {offsets = [0, 8], sizes = [16, 8], strides = [1, 1]} : vector<16x96xf32> to vector<16x8xf32>
    %168 = vector.extract_strided_slice %165 {offsets = [0, 16], sizes = [16, 8], strides = [1, 1]} : vector<16x96xf32> to vector<16x8xf32>
    %169 = vector.extract_strided_slice %165 {offsets = [0, 24], sizes = [16, 8], strides = [1, 1]} : vector<16x96xf32> to vector<16x8xf32>
    %170 = tpu.concatenate %166, %167, %168, %169 in 0 : vector<16x8xf32>, vector<16x8xf32>, vector<16x8xf32>, vector<16x8xf32> -> vector<64x8xf32>
    %171 = vector.extract_strided_slice %165 {offsets = [0, 32], sizes = [16, 8], strides = [1, 1]} : vector<16x96xf32> to vector<16x8xf32>
    %172 = vector.extract_strided_slice %165 {offsets = [0, 40], sizes = [16, 8], strides = [1, 1]} : vector<16x96xf32> to vector<16x8xf32>
    %173 = vector.extract_strided_slice %165 {offsets = [0, 48], sizes = [16, 8], strides = [1, 1]} : vector<16x96xf32> to vector<16x8xf32>
    %174 = vector.extract_strided_slice %165 {offsets = [0, 56], sizes = [16, 8], strides = [1, 1]} : vector<16x96xf32> to vector<16x8xf32>
    %175 = tpu.concatenate %171, %172, %173, %174 in 0 : vector<16x8xf32>, vector<16x8xf32>, vector<16x8xf32>, vector<16x8xf32> -> vector<64x8xf32>
    %176 = vector.extract_strided_slice %165 {offsets = [0, 64], sizes = [16, 8], strides = [1, 1]} : vector<16x96xf32> to vector<16x8xf32>
    %177 = vector.extract_strided_slice %165 {offsets = [0, 72], sizes = [16, 8], strides = [1, 1]} : vector<16x96xf32> to vector<16x8xf32>
    %178 = vector.extract_strided_slice %165 {offsets = [0, 80], sizes = [16, 8], strides = [1, 1]} : vector<16x96xf32> to vector<16x8xf32>
    %179 = vector.extract_strided_slice %165 {offsets = [0, 88], sizes = [16, 8], strides = [1, 1]} : vector<16x96xf32> to vector<16x8xf32>
    %180 = tpu.concatenate %176, %177, %178, %179 in 0 : vector<16x8xf32>, vector<16x8xf32>, vector<16x8xf32>, vector<16x8xf32> -> vector<64x8xf32>
    %cst_81 = arith.constant dense<0.000000e+00> : vector<64x64xf32>
    %181 = tpu.matmul %170, %175, %cst_81 {dimension_numbers = #tpu.dot_dimension_numbers<[1], [1], [0], [0], [0, 0, 1, 0], [], []>} : vector<64x8xf32>, vector<64x8xf32>, vector<64x64xf32> -> vector<64x64xf32>
    %182 = arith.addf %181, %1 : vector<64x64xf32>
    %cst_82 = arith.constant dense<0xFF800000> : vector<64xf32>
    %183 = vector.multi_reduction <maximumf>, %182, %cst_82 [1] : vector<64x64xf32> to vector<64xf32>
    %184 = vector.shape_cast %183 : vector<64xf32> to vector<64x1xf32>
    %185 = vector.broadcast %184 : vector<64x1xf32> to vector<64x64xf32>
    %186 = arith.subf %182, %185 : vector<64x64xf32>
    %187 = math.exp %186 : vector<64x64xf32>
    %cst_83 = arith.constant dense<0.000000e+00> : vector<64xf32>
    %188 = vector.multi_reduction <add>, %187, %cst_83 [1] : vector<64x64xf32> to vector<64xf32>
    %189 = vector.shape_cast %188 : vector<64xf32> to vector<64x1xf32>
    %190 = tpu.reciprocal %189 {approx = true} : vector<64x1xf32> -> vector<64x1xf32>
    %191 = vector.broadcast %190 : vector<64x1xf32> to vector<64x64xf32>
    %192 = arith.mulf %187, %191 : vector<64x64xf32>
    %cst_84 = arith.constant dense<0.000000e+00> : vector<64x8xf32>
    %193 = tpu.matmul %192, %180, %cst_84 {dimension_numbers = #tpu.dot_dimension_numbers<[1], [0], [0], [1], [0, 0, 1, 1], [], []>} : vector<64x64xf32>, vector<64x8xf32>, vector<64x8xf32> -> vector<64x8xf32>
    %194 = vector.extract_strided_slice %193 {offsets = [0, 0], sizes = [16, 8], strides = [1, 1]} : vector<64x8xf32> to vector<16x8xf32>
    %195 = vector.extract_strided_slice %193 {offsets = [16, 0], sizes = [16, 8], strides = [1, 1]} : vector<64x8xf32> to vector<16x8xf32>
    %196 = vector.extract_strided_slice %193 {offsets = [32, 0], sizes = [16, 8], strides = [1, 1]} : vector<64x8xf32> to vector<16x8xf32>
    %197 = vector.extract_strided_slice %193 {offsets = [48, 0], sizes = [16, 8], strides = [1, 1]} : vector<64x8xf32> to vector<16x8xf32>
    %198 = tpu.concatenate %194, %195, %196, %197 in 1 : vector<16x8xf32>, vector<16x8xf32>, vector<16x8xf32>, vector<16x8xf32> -> vector<16x32xf32>
    %cst_85 = arith.constant dense<0.000000e+00> : vector<16x32xf32>
    %199 = tpu.matmul %198, %158, %cst_85 {dimension_numbers = #tpu.dot_dimension_numbers<[1], [0], [0], [1], [0, 0, 1, 1], [], []>} : vector<16x32xf32>, vector<32x32xf32>, vector<16x32xf32> -> vector<16x32xf32>
    %200 = vector.broadcast %148 : vector<1x32xf32> to vector<16x32xf32>
    %201 = arith.addf %199, %200 : vector<16x32xf32>
    %202 = arith.addf %146, %201 : vector<16x32xf32>
    %cst_86 = arith.constant dense<0.000000e+00> : vector<16xf32>
    %203 = vector.multi_reduction <add>, %202, %cst_86 [1] : vector<16x32xf32> to vector<16xf32>
    %204 = vector.shape_cast %203 : vector<16xf32> to vector<16x1xf32>
    %cst_87 = arith.constant 3.200000e+01 : f32
    %205 = vector.broadcast %cst_87 : f32 to vector<16x1xf32>
    %206 = arith.divf %204, %205 : vector<16x1xf32>
    %207 = vector.broadcast %206 : vector<16x1xf32> to vector<16x32xf32>
    %208 = arith.subf %202, %207 : vector<16x32xf32>
    %209 = arith.mulf %208, %208 : vector<16x32xf32>
    %cst_88 = arith.constant dense<0.000000e+00> : vector<16xf32>
    %210 = vector.multi_reduction <add>, %209, %cst_88 [1] : vector<16x32xf32> to vector<16xf32>
    %211 = vector.shape_cast %210 : vector<16xf32> to vector<16x1xf32>
    %cst_89 = arith.constant 3.200000e+01 : f32
    %212 = vector.broadcast %cst_89 : f32 to vector<16x1xf32>
    %213 = arith.divf %211, %212 : vector<16x1xf32>
    %214 = vector.broadcast %206 : vector<16x1xf32> to vector<16x32xf32>
    %215 = arith.subf %202, %214 : vector<16x32xf32>
    %cst_90 = arith.constant 9.99999996E-13 : f32
    %216 = vector.broadcast %cst_90 : f32 to vector<16x1xf32>
    %217 = arith.addf %213, %216 : vector<16x1xf32>
    %218 = math.rsqrt %217 : vector<16x1xf32>
    %219 = vector.broadcast %218 : vector<16x1xf32> to vector<16x32xf32>
    %220 = arith.mulf %215, %219 : vector<16x32xf32>
    %221 = vector.broadcast %151 : vector<1x32xf32> to vector<16x32xf32>
    %222 = arith.mulf %220, %221 : vector<16x32xf32>
    %223 = vector.broadcast %152 : vector<1x32xf32> to vector<16x32xf32>
    %224 = arith.addf %222, %223 : vector<16x32xf32>
    %cst_91 = arith.constant dense<0.000000e+00> : vector<16x64xf32>
    %225 = tpu.matmul %224, %160, %cst_91 {dimension_numbers = #tpu.dot_dimension_numbers<[1], [0], [0], [1], [0, 0, 1, 1], [], []>} : vector<16x32xf32>, vector<32x64xf32>, vector<16x64xf32> -> vector<16x64xf32>
    %226 = vector.broadcast %149 : vector<1x64xf32> to vector<16x64xf32>
    %227 = arith.addf %225, %226 : vector<16x64xf32>
    %228 = arith.mulf %227, %227 : vector<16x64xf32>
    %229 = arith.mulf %227, %228 : vector<16x64xf32>
    %cst_92 = arith.constant 4.471500e-02 : f32
    %230 = vector.broadcast %cst_92 : f32 to vector<16x64xf32>
    %231 = arith.mulf %230, %229 : vector<16x64xf32>
    %232 = arith.addf %227, %231 : vector<16x64xf32>
    %cst_93 = arith.constant 0.797884583 : f32
    %233 = vector.broadcast %cst_93 : f32 to vector<16x64xf32>
    %234 = arith.mulf %233, %232 : vector<16x64xf32>
    %235 = math.tanh %234 : vector<16x64xf32>
    %cst_94 = arith.constant 1.000000e+00 : f32
    %236 = vector.broadcast %cst_94 : f32 to vector<16x64xf32>
    %237 = arith.addf %236, %235 : vector<16x64xf32>
    %cst_95 = arith.constant 5.000000e-01 : f32
    %238 = vector.broadcast %cst_95 : f32 to vector<16x64xf32>
    %239 = arith.mulf %238, %237 : vector<16x64xf32>
    %240 = arith.mulf %227, %239 : vector<16x64xf32>
    %cst_96 = arith.constant dense<0.000000e+00> : vector<16x32xf32>
    %241 = tpu.matmul %240, %162, %cst_96 {dimension_numbers = #tpu.dot_dimension_numbers<[1], [0], [0], [1], [0, 0, 1, 1], [], []>} : vector<16x64xf32>, vector<64x32xf32>, vector<16x32xf32> -> vector<16x32xf32>
    %242 = vector.broadcast %150 : vector<1x32xf32> to vector<16x32xf32>
    %243 = arith.addf %241, %242 : vector<16x32xf32>
    %244 = arith.addf %224, %243 : vector<16x32xf32>
    %cst_97 = arith.constant dense<0.000000e+00> : vector<16xf32>
    %245 = vector.multi_reduction <add>, %244, %cst_97 [1] : vector<16x32xf32> to vector<16xf32>
    %246 = vector.shape_cast %245 : vector<16xf32> to vector<16x1xf32>
    %cst_98 = arith.constant 3.200000e+01 : f32
    %247 = vector.broadcast %cst_98 : f32 to vector<16x1xf32>
    %248 = arith.divf %246, %247 : vector<16x1xf32>
    %249 = vector.broadcast %248 : vector<16x1xf32> to vector<16x32xf32>
    %250 = arith.subf %244, %249 : vector<16x32xf32>
    %251 = arith.mulf %250, %250 : vector<16x32xf32>
    %cst_99 = arith.constant dense<0.000000e+00> : vector<16xf32>
    %252 = vector.multi_reduction <add>, %251, %cst_99 [1] : vector<16x32xf32> to vector<16xf32>
    %253 = vector.shape_cast %252 : vector<16xf32> to vector<16x1xf32>
    %cst_100 = arith.constant 3.200000e+01 : f32
    %254 = vector.broadcast %cst_100 : f32 to vector<16x1xf32>
    %255 = arith.divf %253, %254 : vector<16x1xf32>
    %256 = vector.broadcast %248 : vector<16x1xf32> to vector<16x32xf32>
    %257 = arith.subf %244, %256 : vector<16x32xf32>
    %cst_101 = arith.constant 9.99999996E-13 : f32
    %258 = vector.broadcast %cst_101 : f32 to vector<16x1xf32>
    %259 = arith.addf %255, %258 : vector<16x1xf32>
    %260 = math.rsqrt %259 : vector<16x1xf32>
    %261 = vector.broadcast %260 : vector<16x1xf32> to vector<16x32xf32>
    %262 = arith.mulf %257, %261 : vector<16x32xf32>
    %263 = vector.broadcast %153 : vector<1x32xf32> to vector<16x32xf32>
    %264 = arith.mulf %262, %263 : vector<16x32xf32>
    %265 = vector.broadcast %154 : vector<1x32xf32> to vector<16x32xf32>
    %266 = arith.addf %264, %265 : vector<16x32xf32>
    %cst_102 = arith.constant dense<0.000000e+00> : vector<2x32xf32>
    %267 = tpu.matmul %2, %266, %cst_102 {dimension_numbers = #tpu.dot_dimension_numbers<[1], [0], [0], [1], [0, 0, 1, 1], [], []>} : vector<2x16xf32>, vector<16x32xf32>, vector<2x32xf32> -> vector<2x32xf32>
    %cst_103 = arith.constant dense<0.000000e+00> : vector<2xf32>
    %268 = vector.multi_reduction <add>, %2, %cst_103 [1] : vector<2x16xf32> to vector<2xf32>
    %269 = vector.shape_cast %268 : vector<2xf32> to vector<2x1xf32>
    %cst_104 = arith.constant 9.99999971E-10 : f32
    %270 = vector.broadcast %cst_104 : f32 to vector<2x1xf32>
    %271 = arith.maximumf %269, %270 : vector<2x1xf32>
    %272 = vector.broadcast %271 : vector<2x1xf32> to vector<2x32xf32>
    %273 = arith.divf %267, %272 : vector<2x32xf32>
    %274 = arith.mulf %273, %273 : vector<2x32xf32>
    %cst_105 = arith.constant dense<0.000000e+00> : vector<2xf32>
    %275 = vector.multi_reduction <add>, %274, %cst_105 [1] : vector<2x32xf32> to vector<2xf32>
    %276 = vector.shape_cast %275 : vector<2xf32> to vector<2x1xf32>
    %277 = math.sqrt %276 : vector<2x1xf32>
    %cst_106 = arith.constant 9.99999996E-13 : f32
    %278 = vector.broadcast %cst_106 : f32 to vector<2x1xf32>
    %279 = arith.maximumf %277, %278 : vector<2x1xf32>
    %280 = vector.broadcast %279 : vector<2x1xf32> to vector<2x32xf32>
    %281 = arith.divf %273, %280 : vector<2x32xf32>
    %c0_107 = arith.constant 0 : index
    %c0_108 = arith.constant 0 : index
    %282 = vector.load %arg4[%c0_107, %c0_108] : memref<2x32xf32, #tpu.memory_space<vmem>>, vector<2x32xf32>
    tpu.vector_store %arg4[%c0_107, %c0_108], %281 {strides = array<i32>} : memref<2x32xf32, #tpu.memory_space<vmem>>, vector<2x32xf32>,
    %c88 = arith.constant 88 : index
    %c0_109 = arith.constant 0 : index
    %283 = vector.load %arg0[%c88, %c0_109] : memref<96x64xf32, #tpu.memory_space<vmem>>, vector<2x32xf32>
    %284 = arith.subf %281, %283 : vector<2x32xf32>
    %285 = arith.mulf %284, %284 : vector<2x32xf32>
    %cst_110 = arith.constant dense<0.000000e+00> : vector<2xf32>
    %286 = vector.multi_reduction <add>, %285, %cst_110 [1] : vector<2x32xf32> to vector<2xf32>
    %287 = vector.shape_cast %286 : vector<2xf32> to vector<2x1xf32>
    %cst_111 = arith.constant dense<0.000000e+00> : vector<1xf32>
    %288 = vector.multi_reduction <add>, %287, %cst_111 [0] : vector<2x1xf32> to vector<1xf32>
    %289 = vector.shape_cast %288 : vector<1xf32> to vector<1x1xf32>
    %cst_112 = arith.constant 1.562500e-02 : f32
    %290 = vector.broadcast %cst_112 : f32 to vector<1x1xf32>
    %291 = arith.mulf %289, %290 : vector<1x1xf32>
    %c0_113 = arith.constant 0 : index
    %c0_114 = arith.constant 0 : index
    %292 = vector.load %arg5[%c0_113, %c0_114] : memref<1x1xf32, #tpu.memory_space<vmem>>, vector<1x1xf32>
    tpu.vector_store %arg5[%c0_113, %c0_114], %291 {strides = array<i32>} : memref<1x1xf32, #tpu.memory_space<vmem>>, vector<1x1xf32>,
    return
  }
}

</mosaic_0001>

<llo_original>
// kernel: tpu_custom_call.1
$region0: #{tpu_custom_call.1}
  #allocation0 [shape = 'u32[]', space=smem, size = 0x4, offset = 0x4, fixed_abs, tag = 'smem constant byte address 0x4 - core index']
  #allocation1 [shape = 'u32[72,128]{1,0:T(1,128)}', space=vmem, size = 0x9000, scoped, tag = 'internal scratch']
  %s0 = inlined_call_operand.vmem [shape: f32[96,64], index: 0, kind: input, shape index: {}]
  %s1 = inlined_call_operand.vmem [shape: f32[2,32,128], index: 1, kind: input, shape index: {}]
  %s2 = inlined_call_operand.vmem [shape: f32[2,96,64], index: 2, kind: input, shape index: {}]
  %s3 = inlined_call_operand.vmem [shape: f32[7,128], index: 3, kind: input, shape index: {}]
  %s4 = inlined_call_operand.hbm [shape: f32[2,32], index: 4, kind: output, shape index: {0}]
  %s5 = inlined_call_operand.hbm [shape: f32[1,1], index: 5, kind: output, shape index: {1}]
  %6 = xla_tuple %s4, %s5
  %s7 = sld [smem:[#allocation0]]
  $region34: #{tpu_custom_call.1} parent=0
    _
  %s9 = ssub.s32 1, %s7
  %s10 = scalar_select 0, %s9, %s7
  $region1: #{tpu_custom_call.1} parent=0
    #allocation2 [shape = 'u8[1024]{0}', space=vmem, size = 0x400, scoped, tag = 'output window, operand 0, single buffered']
    #allocation3 [shape = 's32[1]{0}', space=sflag, size = 0x4, scoped, tag = 'scoped memory for tpu_custom_call.1']
    #allocation4 [shape = 'u8[512]{0}', space=vmem, size = 0x400, scoped, tag = 'output window, operand 1, single buffered']
    #allocation5 [shape = 's32[1]{0}', space=sflag, size = 0x4, scoped, tag = 'scoped memory for tpu_custom_call.1']
    %11 = vsyncpa [#allocation3], 0
    %12 = vsyncpa [#allocation5], 0
    // Predicated region
    $region2: #{tpu_custom_call.1} parent=1 // pred_check
      _
    $region3: #{tpu_custom_call.1} parent=1 // pred_check_branch
      %14 = sbr.rel (0) target = $region5
    $region4: #{tpu_custom_call.1} parent=1 // pred_region
      _
    $region5: #{tpu_custom_call.1} parent=1 // pred_fallthru
      _
    // Predicated region
    $region6: #{tpu_custom_call.1} parent=1 // pred_check
      _
    $region7: #{tpu_custom_call.1} parent=1 // pred_check_branch
      %16 = sbr.rel (0) target = $region9
    $region8: #{tpu_custom_call.1} parent=1 // pred_region
      _
    $region9: #{tpu_custom_call.1} parent=1 // pred_fallthru
      _
    // Predicated region
    $region10: #{tpu_custom_call.1} parent=1 // pred_check
      _
    $region11: #{tpu_custom_call.1} parent=1 // pred_check_branch
      %18 = sbr.rel (0) target = $region13
    $region12: #{tpu_custom_call.1} parent=1 // pred_region
      _
    $region13: #{tpu_custom_call.1} parent=1 // pred_fallthru
      _
    // Predicated region
    $region14: #{tpu_custom_call.1} parent=1 // pred_check
      _
    $region15: #{tpu_custom_call.1} parent=1 // pred_check_branch
      %20 = sbr.rel (0) target = $region17
    $region16: #{tpu_custom_call.1} parent=1 // pred_region
      _
    $region17: #{tpu_custom_call.1} parent=1 // pred_fallthru
      _
    %v21 = vld [vmem:[%s0] sm:$0xff]
    %v22 = vld [vmem:[%s0 + $0x8] sm:$0xff]
    %v23 = vld [vmem:[%s0 + $0x10] sm:$0xff]
    %v24 = vld [vmem:[%s0 + $0x18] sm:$0xff]
    %v25 = vld [vmem:[%s0 + $0x20] sm:$0xff]
    %v26 = vld [vmem:[%s0 + $0x28] sm:$0xff]
    %v27 = vld [vmem:[%s0 + $0x30] sm:$0xff]
    %v28 = vld [vmem:[%s0 + $0x38] sm:$0xff]
    %v29 = vld [vmem:[%s0 + $0x40] sm:$0xff]
    %v30 = vld [vmem:[%s0 + $0x48] sm:$0xff]
    %v31 = vld [vmem:[%s0 + $0x50] sm:$0x3]
    %v32 = vld [vmem:[%s3] sm:$0x1]
    %vm33 = vcmask 261120
    %v34 = vsel %vm33, %v21, 0.0
    %35 = vadd.xlane.f32.xlu0 %v34
    %v36 = vpop.xlane.xlu0 %35
    %v37 = vsel %vm33, %v22, 0.0
    %38 = vadd.xlane.f32.xlu0 %v37
    %v39 = vpop.xlane.xlu0 %38
    %v40 = vrcp.pop 32.0
    %v41 = vmul.f32 32.0, %v40
    %v42 = vsub.f32 1.0, %v41
    %v43 = vmul.f32 %v40, %v42
    %v44 = vadd.f32 %v40, %v43
    %vm45 = vweird.f32 %v40
    %v46 = vsel %vm45, %v40, %v44
    %v47 = vmul.f32 %v36, %v46
    %v48 = vmul.f32 %v39, %v46
    %v49 = vsub.f32 %v21, %v47
    %v50 = vsub.f32 %v22, %v48
    %v51 = vmul.f32 %v49, %v49
    %v52 = vmul.f32 %v50, %v50
    %v53 = vsel %vm33, %v51, 0.0
    %54 = vadd.xlane.f32.xlu0 %v53
    %v55 = vpop.xlane.xlu0 %54
    %v56 = vsel %vm33, %v52, 0.0
    %57 = vadd.xlane.f32.xlu0 %v56
    %v58 = vpop.xlane.xlu0 %57
    %v59 = vmul.f32 %v55, %v46
    %v60 = vmul.f32 %v58, %v46
    %v61 = vadd.f32 %v59, 1e-12
    %v62 = vadd.f32 %v60, 1e-12
    %v63 = vrsqrt.pop %v61
    %v64 = vmul.f32 %v63, %v61
    %v65 = vmul.f32 %v64, %v63
    %v66 = vmul.f32 0.5, %v65
    %v67 = vsub.f32 1.5, %v66
    %v68 = vmul.f32 %v63, %v67
    %vm69 = vweird.f32 %v61
    %vm70 = vweird.f32 %v63
    %vm71 = vmor %vm69, %vm70
    %v72 = vsel %vm71, %v63, %v68
    %v73 = vrsqrt.pop %v62
    %v74 = vmul.f32 %v73, %v62
    %v75 = vmul.f32 %v74, %v73
    %v76 = vmul.f32 0.5, %v75
    %v77 = vsub.f32 1.5, %v76
    %v78 = vmul.f32 %v73, %v77
    %vm79 = vweird.f32 %v62
    %vm80 = vweird.f32 %v73
    %vm81 = vmor %vm79, %vm80
    %v82 = vsel %vm81, %v73, %v78
    %v83 = vmul.f32 %v49, %v72
    %v84 = vmul.f32 %v50, %v82
    %v85 = vperm.slane %v32, 0
    %v86 = vmul.f32 %v83, %v85
    %v87 = vmul.f32 %v84, %v85
    %89 = vrot.lane.b32.xlu0 %v85, 96
    %v90 = vpop.permute.xlu0 %89
    %v92 = vadd.f32 %v86, %v90
    %v93 = vadd.f32 %v87, %v90
    %v94 = vld [vmem:[%s3 + $0x1] sm:$0x1]
    %v95 = vld [vmem:[%s3 + $0x2] sm:$0x1]
    %v96 = vld [vmem:[%s3 + $0x3] sm:$0x1]
    %v97 = vld [vmem:[%s1] sm:$0xff]
    %v98 = vld [vmem:[%s1 + $0x8] sm:$0xff]
    %v99 = vld [vmem:[%s1 + $0x10] sm:$0xff]
    %v100 = vld [vmem:[%s1 + $0x18] sm:$0xff]
    %v101 = vld [vmem:[%s2] sm:$0xff]
    %v102 = vld [vmem:[%s2 + $0x8] sm:$0xff]
    %v103 = vld [vmem:[%s2 + $0x10] sm:$0xff]
    %v104 = vld [vmem:[%s2 + $0x18] sm:$0xff]
    %v105 = vld [vmem:[%s2 + $0x20] sm:$0xff]
    %v106 = vld [vmem:[%s2 + $0x28] sm:$0xff]
    %v107 = vld [vmem:[%s2 + $0x30] sm:$0xff]
    %v108 = vld [vmem:[%s2 + $0x38] sm:$0xff]
    %v109 = vld [vmem:[%s2 + $0x40] sm:$0xff]
    %v110 = vld [vmem:[%s2 + $0x48] sm:$0xff]
    %v111 = vld [vmem:[%s2 + $0x50] sm:$0xff]
    %v112 = vld [vmem:[%s2 + $0x58] sm:$0xff]
    %v113 = vperm.slane %v94, 0
    %v115 = vsel %vm33, %v92, 0
    %v118 = vsel %vm33, %v93, 0
    %120 = vmatpush.msra.mxu0 0.0
    %121 = vmatpush.msra.mxu0 0.0
    %122 = vmatpush.msra.mxu0 0.0
    %123 = vmatpush.msra.mxu0 0.0
    %124 = vmatpush.msra.mxu0 0.0
    %125 = vmatpush.msra.mxu0 0.0
    %126 = vmatpush.msra.mxu0 0.0
    %127 = vmatpush.msra.mxu0 0.0
    %128 = vmatpush.msra.mxu0 0.0
    %129 = vmatpush.msra.mxu0 0.0
    %130 = vmatpush.msra.mxu0 0.0
    %131 = vmatpush.msra.mxu0 0.0
    %132 = vmatpush.msra.mxu0 %v100
    %133 = vmatpush.msra.mxu0 %v99
    %134 = vmatpush.msra.mxu0 %v98
    %135 = vmatpush.msra.mxu0 %v97
    %136 = vmatmul.f32.gmra.mxu0 %v115
    %v137 = vpop.f32.mrf.mxu0
    %v138 = vadd.f32 %v113, %v137
    %139 = vmatmul.f32.gmra.mxu0 %v118
    %v140 = vpop.f32.mrf.mxu0
    %v141 = vadd.f32 %v113, %v140
    %142 = vdwg.mxu0
    %145 = vrot.lane.b32.xlu0 %v138, 120
    %v146 = vpop.permute.xlu0 %145
    %147 = vrot.lane.b32.xlu0 %v141, 120
    %v148 = vpop.permute.xlu0 %147
    %149 = vrot.lane.b32.xlu0 %v138, 112
    %v150 = vpop.permute.xlu0 %149
    %151 = vrot.lane.b32.xlu0 %v141, 112
    %v152 = vpop.permute.xlu0 %151
    %153 = vrot.lane.b32.xlu0 %v138, 104
    %v154 = vpop.permute.xlu0 %153
    %155 = vrot.lane.b32.xlu0 %v141, 104
    %v156 = vpop.permute.xlu0 %155
    %157 = vrot.lane.b32.xlu0 %v138, 96
    %v158 = vpop.permute.xlu0 %157
    %159 = vrot.lane.b32.xlu0 %v141, 96
    %v160 = vpop.permute.xlu0 %159
    %161 = vrot.lane.b32.xlu0 %v146, 96
    %v162 = vpop.permute.xlu0 %161
    %163 = vrot.lane.b32.xlu0 %v148, 96
    %v164 = vpop.permute.xlu0 %163
    %165 = vrot.lane.b32.xlu0 %v150, 96
    %v166 = vpop.permute.xlu0 %165
    %167 = vrot.lane.b32.xlu0 %v152, 96
    %v168 = vpop.permute.xlu0 %167
    %169 = vrot.lane.b32.xlu0 %v154, 96
    %v170 = vpop.permute.xlu0 %169
    %171 = vrot.lane.b32.xlu0 %v156, 96
    %v172 = vpop.permute.xlu0 %171
    %vm173 = vcmask 64512
    %v174 = vsel %vm173, %v138, 0
    %v176 = vsel %vm173, %v141, 0
    %v178 = vsel %vm173, %v146, 0
    %v180 = vsel %vm173, %v148, 0
    %v182 = vsel %vm173, %v150, 0
    %v184 = vsel %vm173, %v152, 0
    %v186 = vsel %vm173, %v154, 0
    %v188 = vsel %vm173, %v156, 0
    %v190 = vsel %vm173, %v158, 0
    %v192 = vsel %vm173, %v160, 0
    %v194 = vsel %vm173, %v162, 0
    %v196 = vsel %vm173, %v164, 0
    %v198 = vsel %vm173, %v166, 0
    %v200 = vsel %vm173, %v168, 0
    %v202 = vsel %vm173, %v170, 0
    %v204 = vsel %vm173, %v172, 0
    %206 = vmatpush.xpose.msra.mxu0 0.0
    %207 = vmatpush.xpose.msra.mxu0 0.0
    %208 = vmatpush.xpose.msra.mxu0 0.0
    %209 = vmatpush.xpose.msra.mxu0 0.0
    %210 = vmatpush.xpose.msra.mxu0 0.0
    %211 = vmatpush.xpose.msra.mxu0 0.0
    %212 = vmatpush.xpose.msra.mxu0 0.0
    %213 = vmatpush.xpose.msra.mxu0 0.0
    %214 = vmatpush.xpose.msra.mxu0 %v204
    %215 = vmatpush.xpose.msra.mxu0 %v202
    %216 = vmatpush.xpose.msra.mxu0 %v200
    %217 = vmatpush.xpose.msra.mxu0 %v198
    %218 = vmatpush.xpose.msra.mxu0 %v196
    %219 = vmatpush.xpose.msra.mxu0 %v194
    %220 = vmatpush.xpose.msra.mxu0 %v192
    %221 = vmatpush.xpose.msra.mxu0 %v190
    %222 = vmatmul.f32.gmra.mxu0 %v174
    %v223 = vpop.f32.mrf.mxu0
    %v224 = vadd.f32 %v23, %v223
    %225 = vmatmul.f32.gmra.mxu0 %v176
    %v226 = vpop.f32.mrf.mxu0
    %v227 = vadd.f32 %v24, %v226
    %228 = vmatmul.f32.gmra.mxu0 %v178
    %v229 = vpop.f32.mrf.mxu0
    %v230 = vadd.f32 %v25, %v229
    %231 = vmatmul.f32.gmra.mxu0 %v180
    %v232 = vpop.f32.mrf.mxu0
    %v233 = vadd.f32 %v26, %v232
    %234 = vmatmul.f32.gmra.mxu0 %v182
    %v235 = vpop.f32.mrf.mxu0
    %v236 = vadd.f32 %v27, %v235
    %237 = vmatmul.f32.gmra.mxu0 %v184
    %v238 = vpop.f32.mrf.mxu0
    %v239 = vadd.f32 %v28, %v238
    %240 = vmatmul.f32.gmra.mxu0 %v186
    %v241 = vpop.f32.mrf.mxu0
    %v242 = vadd.f32 %v29, %v241
    %243 = vmatmul.f32.gmra.mxu0 %v188
    %v244 = vpop.f32.mrf.mxu0
    %v245 = vadd.f32 %v30, %v244
    %246 = vdwg.mxu0
    %vm247 = vcmask 523264
    %v248 = vsel %vm247, %v224, -inf
    %249 = vmax.xlane.f32.xlu0 %v248
    %v250 = vpop.xlane.xlu0 %249
    %v251 = vsel %vm247, %v227, -inf
    %252 = vmax.xlane.f32.xlu0 %v251
    %v253 = vpop.xlane.xlu0 %252
    %v254 = vsel %vm247, %v230, -inf
    %255 = vmax.xlane.f32.xlu0 %v254
    %v256 = vpop.xlane.xlu0 %255
    %v257 = vsel %vm247, %v233, -inf
    %258 = vmax.xlane.f32.xlu0 %v257
    %v259 = vpop.xlane.xlu0 %258
    %v260 = vsel %vm247, %v236, -inf
    %261 = vmax.xlane.f32.xlu0 %v260
    %v262 = vpop.xlane.xlu0 %261
    %v263 = vsel %vm247, %v239, -inf
    %264 = vmax.xlane.f32.xlu0 %v263
    %v265 = vpop.xlane.xlu0 %264
    %v266 = vsel %vm247, %v242, -inf
    %267 = vmax.xlane.f32.xlu0 %v266
    %v268 = vpop.xlane.xlu0 %267
    %v269 = vsel %vm247, %v245, -inf
    %270 = vmax.xlane.f32.xlu0 %v269
    %v271 = vpop.xlane.xlu0 %270
    %v272 = vsub.f32 %v224, %v250
    %v273 = vsub.f32 %v227, %v253
    %v274 = vsub.f32 %v230, %v256
    %v275 = vsub.f32 %v233, %v259
    %v276 = vsub.f32 %v236, %v262
    %v277 = vsub.f32 %v239, %v265
    %v278 = vsub.f32 %v242, %v268
    %v279 = vsub.f32 %v245, %v271
    %v280 = vmul.f32 %v272, 1.442695
    %v281 = vpow.pop %v280
    %v282 = vmul.f32 %v273, 1.442695
    %v283 = vpow.pop %v282
    %v284 = vmul.f32 %v274, 1.442695
    %v285 = vpow.pop %v284
    %v286 = vmul.f32 %v275, 1.442695
    %v287 = vpow.pop %v286
    %v288 = vmul.f32 %v276, 1.442695
    %v289 = vpow.pop %v288
    %v290 = vmul.f32 %v277, 1.442695
    %v291 = vpow.pop %v290
    %v292 = vmul.f32 %v278, 1.442695
    %v293 = vpow.pop %v292
    %v294 = vmul.f32 %v279, 1.442695
    %v295 = vpow.pop %v294
    %v296 = vsel %vm247, %v281, 0.0
    %297 = vadd.xlane.f32.xlu0 %v296
    %v298 = vpop.xlane.xlu0 %297
    %v299 = vsel %vm247, %v283, 0.0
    %300 = vadd.xlane.f32.xlu0 %v299
    %v301 = vpop.xlane.xlu0 %300
    %v302 = vsel %vm247, %v285, 0.0
    %303 = vadd.xlane.f32.xlu0 %v302
    %v304 = vpop.xlane.xlu0 %303
    %v305 = vsel %vm247, %v287, 0.0
    %306 = vadd.xlane.f32.xlu0 %v305
    %v307 = vpop.xlane.xlu0 %306
    %v308 = vsel %vm247, %v289, 0.0
    %309 = vadd.xlane.f32.xlu0 %v308
    %v310 = vpop.xlane.xlu0 %309
    %v311 = vsel %vm247, %v291, 0.0
    %312 = vadd.xlane.f32.xlu0 %v311
    %v313 = vpop.xlane.xlu0 %312
    %v314 = vsel %vm247, %v293, 0.0
    %315 = vadd.xlane.f32.xlu0 %v314
    %v316 = vpop.xlane.xlu0 %315
    %v317 = vsel %vm247, %v295, 0.0
    %318 = vadd.xlane.f32.xlu0 %v317
    %v319 = vpop.xlane.xlu0 %318
    %v320 = vrcp.pop %v298
    %v321 = vrcp.pop %v301
    %v322 = vrcp.pop %v304
    %v323 = vrcp.pop %v307
    %v324 = vrcp.pop %v310
    %v325 = vrcp.pop %v313
    %v326 = vrcp.pop %v316
    %v327 = vrcp.pop %v319
    %v328 = vmul.f32 %v281, %v320
    %v329 = vmul.f32 %v283, %v321
    %v330 = vmul.f32 %v285, %v322
    %v331 = vmul.f32 %v287, %v323
    %v332 = vmul.f32 %v289, %v324
    %v333 = vmul.f32 %v291, %v325
    %v334 = vmul.f32 %v293, %v326
    %v335 = vmul.f32 %v295, %v327
    %336 = vrot.lane.b32.xlu0 %v138, 64
    %v337 = vpop.permute.xlu0 %336
    %338 = vrot.lane.b32.xlu0 %v141, 64
    %v339 = vpop.permute.xlu0 %338
    %340 = vrot.lane.b32.xlu0 %v146, 64
    %v341 = vpop.permute.xlu0 %340
    %342 = vrot.lane.b32.xlu0 %v148, 64
    %v343 = vpop.permute.xlu0 %342
    %344 = vrot.lane.b32.xlu0 %v150, 64
    %v345 = vpop.permute.xlu0 %344
    %346 = vrot.lane.b32.xlu0 %v152, 64
    %v347 = vpop.permute.xlu0 %346
    %348 = vrot.lane.b32.xlu0 %v154, 64
    %v349 = vpop.permute.xlu0 %348
    %350 = vrot.lane.b32.xlu0 %v156, 64
    %v351 = vpop.permute.xlu0 %350
    %v361 = vsel %vm247, %v328, 0
    %v364 = vsel %vm247, %v329, 0
    %v367 = vsel %vm247, %v330, 0
    %v370 = vsel %vm247, %v331, 0
    %v373 = vsel %vm247, %v332, 0
    %v376 = vsel %vm247, %v333, 0
    %v379 = vsel %vm247, %v334, 0
    %v382 = vsel %vm247, %v335, 0
    %384 = vmatpush.msra.mxu0 0.0
    %385 = vmatpush.msra.mxu0 0.0
    %386 = vmatpush.msra.mxu0 0.0
    %387 = vmatpush.msra.mxu0 0.0
    %388 = vmatpush.msra.mxu0 0.0
    %389 = vmatpush.msra.mxu0 0.0
    %390 = vmatpush.msra.mxu0 0.0
    %391 = vmatpush.msra.mxu0 0.0
    %392 = vmatpush.msra.mxu0 %v351
    %393 = vmatpush.msra.mxu0 %v349
    %394 = vmatpush.msra.mxu0 %v347
    %395 = vmatpush.msra.mxu0 %v345
    %396 = vmatpush.msra.mxu0 %v343
    %397 = vmatpush.msra.mxu0 %v341
    %398 = vmatpush.msra.mxu0 %v339
    %399 = vmatpush.msra.mxu0 %v337
    %400 = vmatmul.f32.gmra.mxu0 %v361
    %v401 = vpop.f32.mrf.mxu0
    %v402 = vadd.f32 0.0, %v401
    %403 = vmatmul.f32.gmra.mxu0 %v364
    %v404 = vpop.f32.mrf.mxu0
    %v405 = vadd.f32 0.0, %v404
    %406 = vmatmul.f32.gmra.mxu0 %v367
    %v407 = vpop.f32.mrf.mxu0
    %v408 = vadd.f32 0.0, %v407
    %409 = vmatmul.f32.gmra.mxu0 %v370
    %v410 = vpop.f32.mrf.mxu0
    %v411 = vadd.f32 0.0, %v410
    %412 = vmatmul.f32.gmra.mxu0 %v373
    %v413 = vpop.f32.mrf.mxu0
    %v414 = vadd.f32 0.0, %v413
    %415 = vmatmul.f32.gmra.mxu0 %v376
    %v416 = vpop.f32.mrf.mxu0
    %v417 = vadd.f32 0.0, %v416
    %418 = vmatmul.f32.gmra.mxu0 %v379
    %v419 = vpop.f32.mrf.mxu0
    %v420 = vadd.f32 0.0, %v419
    %421 = vmatmul.f32.gmra.mxu0 %v382
    %v422 = vpop.f32.mrf.mxu0
    %v423 = vadd.f32 0.0, %v422
    %424 = vdwg.mxu0
    %427 = vrot.lane.b32.xlu0 %v408, 8
    %v428 = vpop.permute.xlu0 %427
    %429 = vrot.lane.b32.xlu0 %v411, 8
    %v430 = vpop.permute.xlu0 %429
    %435 = vrot.lane.b32.xlu0 %v414, 16
    %v436 = vpop.permute.xlu0 %435
    %437 = vrot.lane.b32.xlu0 %v417, 16
    %v438 = vpop.permute.xlu0 %437
    %443 = vrot.lane.b32.xlu0 %v420, 24
    %v444 = vpop.permute.xlu0 %443
    %445 = vrot.lane.b32.xlu0 %v423, 24
    %v446 = vpop.permute.xlu0 %445
    %v449 = vsel %vm173, %v402, %v428
    %v450 = vsel %vm173, %v405, %v430
    %vm451 = vcmask 130048
    %v452 = vsel %vm451, %v449, %v436
    %v453 = vsel %vm451, %v450, %v438
    %vm454 = vcmask 195584
    %v455 = vsel %vm454, %v452, %v444
    %v456 = vsel %vm454, %v453, %v446
    %461 = vrot.lane.b32.xlu0 %v97, 32
    %v462 = vpop.permute.xlu0 %461
    %463 = vrot.lane.b32.xlu0 %v98, 32
    %v464 = vpop.permute.xlu0 %463
    %465 = vrot.lane.b32.xlu0 %v99, 32
    %v466 = vpop.permute.xlu0 %465
    %467 = vrot.lane.b32.xlu0 %v100, 32
    %v468 = vpop.permute.xlu0 %467
    %474 = vrot.lane.b32.xlu0 %v113, 32
    %v475 = vpop.permute.xlu0 %474
    %v478 = vsel %vm33, %v455, 0
    %v481 = vsel %vm33, %v456, 0
    %483 = vmatpush.msra.mxu0 0.0
    %484 = vmatpush.msra.mxu0 0.0
    %485 = vmatpush.msra.mxu0 0.0
    %486 = vmatpush.msra.mxu0 0.0
    %487 = vmatpush.msra.mxu0 0.0
    %488 = vmatpush.msra.mxu0 0.0
    %489 = vmatpush.msra.mxu0 0.0
    %490 = vmatpush.msra.mxu0 0.0
    %491 = vmatpush.msra.mxu0 0.0
    %492 = vmatpush.msra.mxu0 0.0
    %493 = vmatpush.msra.mxu0 0.0
    %494 = vmatpush.msra.mxu0 0.0
    %495 = vmatpush.msra.mxu0 %v468
    %496 = vmatpush.msra.mxu0 %v466
    %497 = vmatpush.msra.mxu0 %v464
    %498 = vmatpush.msra.mxu0 %v462
    %499 = vmatmul.f32.gmra.mxu0 %v478
    %v500 = vpop.f32.mrf.mxu0
    %v501 = vadd.f32 %v475, %v500
    %502 = vmatmul.f32.gmra.mxu0 %v481
    %v503 = vpop.f32.mrf.mxu0
    %v504 = vadd.f32 %v475, %v503
    %505 = vdwg.mxu0
    %v506 = vadd.f32 %v92, %v501
    %v507 = vadd.f32 %v93, %v504
    %v508 = vsel %vm33, %v506, 0.0
    %509 = vadd.xlane.f32.xlu0 %v508
    %v510 = vpop.xlane.xlu0 %509
    %v511 = vsel %vm33, %v507, 0.0
    %512 = vadd.xlane.f32.xlu0 %v511
    %v513 = vpop.xlane.xlu0 %512
    %v514 = vmul.f32 %v510, %v46
    %v515 = vmul.f32 %v513, %v46
    %v516 = vsub.f32 %v506, %v514
    %v517 = vsub.f32 %v507, %v515
    %v518 = vmul.f32 %v516, %v516
    %v519 = vmul.f32 %v517, %v517
    %v520 = vsel %vm33, %v518, 0.0
    %521 = vadd.xlane.f32.xlu0 %v520
    %v522 = vpop.xlane.xlu0 %521
    %v523 = vsel %vm33, %v519, 0.0
    %524 = vadd.xlane.f32.xlu0 %v523
    %v525 = vpop.xlane.xlu0 %524
    %v526 = vmul.f32 %v522, %v46
    %v527 = vmul.f32 %v525, %v46
    %v528 = vadd.f32 %v526, 1e-12
    %v529 = vadd.f32 %v527, 1e-12
    %v530 = vrsqrt.pop %v528
    %v531 = vmul.f32 %v530, %v528
    %v532 = vmul.f32 %v531, %v530
    %v533 = vmul.f32 0.5, %v532
    %v534 = vsub.f32 1.5, %v533
    %v535 = vmul.f32 %v530, %v534
    %vm536 = vweird.f32 %v528
    %vm537 = vweird.f32 %v530
    %vm538 = vmor %vm536, %vm537
    %v539 = vsel %vm538, %v530, %v535
    %v540 = vrsqrt.pop %v529
    %v541 = vmul.f32 %v540, %v529
    %v542 = vmul.f32 %v541, %v540
    %v543 = vmul.f32 0.5, %v542
    %v544 = vsub.f32 1.5, %v543
    %v545 = vmul.f32 %v540, %v544
    %vm546 = vweird.f32 %v529
    %vm547 = vweird.f32 %v540
    %vm548 = vmor %vm546, %vm547
    %v549 = vsel %vm548, %v540, %v545
    %v550 = vmul.f32 %v516, %v539
    %v551 = vmul.f32 %v517, %v549
    %v552 = vperm.slane %v96, 0
    %v553 = vmul.f32 %v550, %v552
    %v554 = vmul.f32 %v551, %v552
    %556 = vrot.lane.b32.xlu0 %v552, 96
    %v557 = vpop.permute.xlu0 %556
    %v559 = vadd.f32 %v553, %v557
    %v560 = vadd.f32 %v554, %v557
    %v561 = vperm.slane %v95, 0
    %v563 = vsel %vm33, %v559, 0
    %v566 = vsel %vm33, %v560, 0
    %568 = vmatpush.msra.mxu0 0.0
    %569 = vmatpush.msra.mxu0 0.0
    %570 = vmatpush.msra.mxu0 0.0
    %571 = vmatpush.msra.mxu0 0.0
    %572 = vmatpush.msra.mxu0 0.0
    %573 = vmatpush.msra.mxu0 0.0
    %574 = vmatpush.msra.mxu0 0.0
    %575 = vmatpush.msra.mxu0 0.0
    %576 = vmatpush.msra.mxu0 0.0
    %577 = vmatpush.msra.mxu0 0.0
    %578 = vmatpush.msra.mxu0 0.0
    %579 = vmatpush.msra.mxu0 0.0
    %580 = vmatpush.msra.mxu0 %v104
    %581 = vmatpush.msra.mxu0 %v103
    %582 = vmatpush.msra.mxu0 %v102
    %583 = vmatpush.msra.mxu0 %v101
    %584 = vmatmul.f32.gmra.mxu0 %v563
    %v585 = vpop.f32.mrf.mxu0
    %v586 = vadd.f32 %v561, %v585
    %587 = vmatmul.f32.gmra.mxu0 %v566
    %v588 = vpop.f32.mrf.mxu0
    %v589 = vadd.f32 %v561, %v588
    %590 = vdwg.mxu0
    %v591 = vmul.f32 %v586, %v586
    %v592 = vmul.f32 %v589, %v589
    %v593 = vmul.f32 %v586, %v591
    %v594 = vmul.f32 %v589, %v592
    %v595 = vmul.f32 %v593, 0.044715
    %v596 = vmul.f32 %v594, 0.044715
    %v597 = vadd.f32 %v586, %v595
    %v598 = vadd.f32 %v589, %v596
    %v599 = vmul.f32 %v597, 0.7978846
    %v600 = vmul.f32 %v598, 0.7978846
    %v601 = vtanh.pop %v599
    %v602 = vtanh.pop %v600
    %v603 = vadd.f32 %v601, 1.0
    %v604 = vadd.f32 %v602, 1.0
    %v605 = vmul.f32 %v603, 0.5
    %v606 = vmul.f32 %v604, 0.5
    %v607 = vmul.f32 %v586, %v605
    %v608 = vmul.f32 %v589, %v606
    %610 = vrot.lane.b32.xlu0 %v561, 64
    %v611 = vpop.permute.xlu0 %610
    %v614 = vsel %vm247, %v607, 0
    %v617 = vsel %vm247, %v608, 0
    %619 = vmatpush.msra.mxu0 0.0
    %620 = vmatpush.msra.mxu0 0.0
    %621 = vmatpush.msra.mxu0 0.0
    %622 = vmatpush.msra.mxu0 0.0
    %623 = vmatpush.msra.mxu0 0.0
    %624 = vmatpush.msra.mxu0 0.0
    %625 = vmatpush.msra.mxu0 0.0
    %626 = vmatpush.msra.mxu0 0.0
    %627 = vmatpush.msra.mxu0 %v112
    %628 = vmatpush.msra.mxu0 %v111
    %629 = vmatpush.msra.mxu0 %v110
    %630 = vmatpush.msra.mxu0 %v109
    %631 = vmatpush.msra.mxu0 %v108
    %632 = vmatpush.msra.mxu0 %v107
    %633 = vmatpush.msra.mxu0 %v106
    %634 = vmatpush.msra.mxu0 %v105
    %635 = vmatmul.f32.gmra.mxu0 %v614
    %v636 = vpop.f32.mrf.mxu0
    %v637 = vadd.f32 %v611, %v636
    %638 = vmatmul.f32.gmra.mxu0 %v617
    %v639 = vpop.f32.mrf.mxu0
    %v640 = vadd.f32 %v611, %v639
    %641 = vdwg.mxu0
    %v642 = vadd.f32 %v559, %v637
    %v643 = vadd.f32 %v560, %v640
    %v644 = vsel %vm33, %v642, 0.0
    %645 = vadd.xlane.f32.xlu0 %v644
    %v646 = vpop.xlane.xlu0 %645
    %v647 = vsel %vm33, %v643, 0.0
    %648 = vadd.xlane.f32.xlu0 %v647
    %v649 = vpop.xlane.xlu0 %648
    %v650 = vmul.f32 %v646, %v46
    %v651 = vmul.f32 %v649, %v46
    %v652 = vsub.f32 %v642, %v650
    %v653 = vsub.f32 %v643, %v651
    %v654 = vmul.f32 %v652, %v652
    %v655 = vmul.f32 %v653, %v653
    %v656 = vsel %vm33, %v654, 0.0
    %657 = vadd.xlane.f32.xlu0 %v656
    %v658 = vpop.xlane.xlu0 %657
    %v659 = vsel %vm33, %v655, 0.0
    %660 = vadd.xlane.f32.xlu0 %v659
    %v661 = vpop.xlane.xlu0 %660
    %v662 = vmul.f32 %v658, %v46
    %v663 = vmul.f32 %v661, %v46
    %v664 = vadd.f32 %v662, 1e-12
    %v665 = vadd.f32 %v663, 1e-12
    %v666 = vrsqrt.pop %v664
    %v667 = vmul.f32 %v666, %v664
    %v668 = vmul.f32 %v667, %v666
    %v669 = vmul.f32 0.5, %v668
    %v670 = vsub.f32 1.5, %v669
    %v671 = vmul.f32 %v666, %v670
    %vm672 = vweird.f32 %v664
    %vm673 = vweird.f32 %v666
    %vm674 = vmor %vm672, %vm673
    %v675 = vsel %vm674, %v666, %v671
    %v676 = vrsqrt.pop %v665
    %v677 = vmul.f32 %v676, %v665
    %v678 = vmul.f32 %v677, %v676
    %v679 = vmul.f32 0.5, %v678
    %v680 = vsub.f32 1.5, %v679
    %v681 = vmul.f32 %v676, %v680
    %vm682 = vweird.f32 %v665
    %vm683 = vweird.f32 %v676
    %vm684 = vmor %vm682, %vm683
    %v685 = vsel %vm684, %v676, %v681
    %v686 = vmul.f32 %v652, %v675
    %v687 = vmul.f32 %v653, %v685
    %688 = vrot.lane.b32.xlu0 %v552, 64
    %v689 = vpop.permute.xlu0 %688
    %v691 = vmul.f32 %v686, %v689
    %v692 = vmul.f32 %v687, %v689
    %693 = vrot.lane.b32.xlu0 %v552, 32
    %v694 = vpop.permute.xlu0 %693
    %v696 = vadd.f32 %v691, %v694
    %v697 = vadd.f32 %v692, %v694
    %v698 = vld [vmem:[%s3 + $0x4] sm:$0x1]
    %v699 = vld [vmem:[%s3 + $0x5] sm:$0x1]
    %v700 = vld [vmem:[%s3 + $0x6] sm:$0x1]
    %s701 = scalar_lea.vmem %s1, 32
    %v702 = vld [vmem:[%s701] sm:$0xff]
    %v703 = vld [vmem:[%s701 + $0x8] sm:$0xff]
    %v704 = vld [vmem:[%s701 + $0x10] sm:$0xff]
    %v705 = vld [vmem:[%s701 + $0x18] sm:$0xff]
    %s706 = scalar_lea.vmem %s2, 96
    %v707 = vld [vmem:[%s706] sm:$0xff]
    %v708 = vld [vmem:[%s706 + $0x8] sm:$0xff]
    %v709 = vld [vmem:[%s706 + $0x10] sm:$0xff]
    %v710 = vld [vmem:[%s706 + $0x18] sm:$0xff]
    %v711 = vld [vmem:[%s706 + $0x20] sm:$0xff]
    %v712 = vld [vmem:[%s706 + $0x28] sm:$0xff]
    %v713 = vld [vmem:[%s706 + $0x30] sm:$0xff]
    %v714 = vld [vmem:[%s706 + $0x38] sm:$0xff]
    %v715 = vld [vmem:[%s706 + $0x40] sm:$0xff]
    %v716 = vld [vmem:[%s706 + $0x48] sm:$0xff]
    %v717 = vld [vmem:[%s706 + $0x50] sm:$0xff]
    %v718 = vld [vmem:[%s706 + $0x58] sm:$0xff]
    %v719 = vperm.slane %v698, 0
    %v721 = vsel %vm33, %v696, 0
    %v724 = vsel %vm33, %v697, 0
    %726 = vmatpush.msra.mxu0 0.0
    %727 = vmatpush.msra.mxu0 0.0
    %728 = vmatpush.msra.mxu0 0.0
    %729 = vmatpush.msra.mxu0 0.0
    %730 = vmatpush.msra.mxu0 0.0
    %731 = vmatpush.msra.mxu0 0.0
    %732 = vmatpush.msra.mxu0 0.0
    %733 = vmatpush.msra.mxu0 0.0
    %734 = vmatpush.msra.mxu0 0.0
    %735 = vmatpush.msra.mxu0 0.0
    %736 = vmatpush.msra.mxu0 0.0
    %737 = vmatpush.msra.mxu0 0.0
    %738 = vmatpush.msra.mxu0 %v705
    %739 = vmatpush.msra.mxu0 %v704
    %740 = vmatpush.msra.mxu0 %v703
    %741 = vmatpush.msra.mxu0 %v702
    %742 = vmatmul.f32.gmra.mxu0 %v721
    %v743 = vpop.f32.mrf.mxu0
    %v744 = vadd.f32 %v719, %v743
    %745 = vmatmul.f32.gmra.mxu0 %v724
    %v746 = vpop.f32.mrf.mxu0
    %v747 = vadd.f32 %v719, %v746
    %748 = vdwg.mxu0
    %751 = vrot.lane.b32.xlu0 %v744, 120
    %v752 = vpop.permute.xlu0 %751
    %753 = vrot.lane.b32.xlu0 %v747, 120
    %v754 = vpop.permute.xlu0 %753
    %755 = vrot.lane.b32.xlu0 %v744, 112
    %v756 = vpop.permute.xlu0 %755
    %757 = vrot.lane.b32.xlu0 %v747, 112
    %v758 = vpop.permute.xlu0 %757
    %759 = vrot.lane.b32.xlu0 %v744, 104
    %v760 = vpop.permute.xlu0 %759
    %761 = vrot.lane.b32.xlu0 %v747, 104
    %v762 = vpop.permute.xlu0 %761
    %763 = vrot.lane.b32.xlu0 %v744, 96
    %v764 = vpop.permute.xlu0 %763
    %765 = vrot.lane.b32.xlu0 %v747, 96
    %v766 = vpop.permute.xlu0 %765
    %767 = vrot.lane.b32.xlu0 %v752, 96
    %v768 = vpop.permute.xlu0 %767
    %769 = vrot.lane.b32.xlu0 %v754, 96
    %v770 = vpop.permute.xlu0 %769
    %771 = vrot.lane.b32.xlu0 %v756, 96
    %v772 = vpop.permute.xlu0 %771
    %773 = vrot.lane.b32.xlu0 %v758, 96
    %v774 = vpop.permute.xlu0 %773
    %775 = vrot.lane.b32.xlu0 %v760, 96
    %v776 = vpop.permute.xlu0 %775
    %777 = vrot.lane.b32.xlu0 %v762, 96
    %v778 = vpop.permute.xlu0 %777
    %v779 = vsel %vm173, %v744, 0
    %v781 = vsel %vm173, %v747, 0
    %v783 = vsel %vm173, %v752, 0
    %v785 = vsel %vm173, %v754, 0
    %v787 = vsel %vm173, %v756, 0
    %v789 = vsel %vm173, %v758, 0
    %v791 = vsel %vm173, %v760, 0
    %v793 = vsel %vm173, %v762, 0
    %v795 = vsel %vm173, %v764, 0
    %v797 = vsel %vm173, %v766, 0
    %v799 = vsel %vm173, %v768, 0
    %v801 = vsel %vm173, %v770, 0
    %v803 = vsel %vm173, %v772, 0
    %v805 = vsel %vm173, %v774, 0
    %v807 = vsel %vm173, %v776, 0
    %v809 = vsel %vm173, %v778, 0
    %811 = vmatpush.xpose.msra.mxu0 0.0
    %812 = vmatpush.xpose.msra.mxu0 0.0
    %813 = vmatpush.xpose.msra.mxu0 0.0
    %814 = vmatpush.xpose.msra.mxu0 0.0
    %815 = vmatpush.xpose.msra.mxu0 0.0
    %816 = vmatpush.xpose.msra.mxu0 0.0
    %817 = vmatpush.xpose.msra.mxu0 0.0
    %818 = vmatpush.xpose.msra.mxu0 0.0
    %819 = vmatpush.xpose.msra.mxu0 %v809
    %820 = vmatpush.xpose.msra.mxu0 %v807
    %821 = vmatpush.xpose.msra.mxu0 %v805
    %822 = vmatpush.xpose.msra.mxu0 %v803
    %823 = vmatpush.xpose.msra.mxu0 %v801
    %824 = vmatpush.xpose.msra.mxu0 %v799
    %825 = vmatpush.xpose.msra.mxu0 %v797
    %826 = vmatpush.xpose.msra.mxu0 %v795
    %827 = vmatmul.f32.gmra.mxu0 %v779
    %v828 = vpop.f32.mrf.mxu0
    %v829 = vadd.f32 %v23, %v828
    %830 = vmatmul.f32.gmra.mxu0 %v781
    %v831 = vpop.f32.mrf.mxu0
    %v832 = vadd.f32 %v24, %v831
    %833 = vmatmul.f32.gmra.mxu0 %v783
    %v834 = vpop.f32.mrf.mxu0
    %v835 = vadd.f32 %v25, %v834
    %836 = vmatmul.f32.gmra.mxu0 %v785
    %v837 = vpop.f32.mrf.mxu0
    %v838 = vadd.f32 %v26, %v837
    %839 = vmatmul.f32.gmra.mxu0 %v787
    %v840 = vpop.f32.mrf.mxu0
    %v841 = vadd.f32 %v27, %v840
    %842 = vmatmul.f32.gmra.mxu0 %v789
    %v843 = vpop.f32.mrf.mxu0
    %v844 = vadd.f32 %v28, %v843
    %845 = vmatmul.f32.gmra.mxu0 %v791
    %v846 = vpop.f32.mrf.mxu0
    %v847 = vadd.f32 %v29, %v846
    %848 = vmatmul.f32.gmra.mxu0 %v793
    %v849 = vpop.f32.mrf.mxu0
    %v850 = vadd.f32 %v30, %v849
    %851 = vdwg.mxu0
    %v852 = vsel %vm247, %v829, -inf
    %853 = vmax.xlane.f32.xlu0 %v852
    %v854 = vpop.xlane.xlu0 %853
    %v855 = vsel %vm247, %v832, -inf
    %856 = vmax.xlane.f32.xlu0 %v855
    %v857 = vpop.xlane.xlu0 %856
    %v858 = vsel %vm247, %v835, -inf
    %859 = vmax.xlane.f32.xlu0 %v858
    %v860 = vpop.xlane.xlu0 %859
    %v861 = vsel %vm247, %v838, -inf
    %862 = vmax.xlane.f32.xlu0 %v861
    %v863 = vpop.xlane.xlu0 %862
    %v864 = vsel %vm247, %v841, -inf
    %865 = vmax.xlane.f32.xlu0 %v864
    %v866 = vpop.xlane.xlu0 %865
    %v867 = vsel %vm247, %v844, -inf
    %868 = vmax.xlane.f32.xlu0 %v867
    %v869 = vpop.xlane.xlu0 %868
    %v870 = vsel %vm247, %v847, -inf
    %871 = vmax.xlane.f32.xlu0 %v870
    %v872 = vpop.xlane.xlu0 %871
    %v873 = vsel %vm247, %v850, -inf
    %874 = vmax.xlane.f32.xlu0 %v873
    %v875 = vpop.xlane.xlu0 %874
    %v876 = vsub.f32 %v829, %v854
    %v877 = vsub.f32 %v832, %v857
    %v878 = vsub.f32 %v835, %v860
    %v879 = vsub.f32 %v838, %v863
    %v880 = vsub.f32 %v841, %v866
    %v881 = vsub.f32 %v844, %v869
    %v882 = vsub.f32 %v847, %v872
    %v883 = vsub.f32 %v850, %v875
    %v884 = vmul.f32 %v876, 1.442695
    %v885 = vpow.pop %v884
    %v886 = vmul.f32 %v877, 1.442695
    %v887 = vpow.pop %v886
    %v888 = vmul.f32 %v878, 1.442695
    %v889 = vpow.pop %v888
    %v890 = vmul.f32 %v879, 1.442695
    %v891 = vpow.pop %v890
    %v892 = vmul.f32 %v880, 1.442695
    %v893 = vpow.pop %v892
    %v894 = vmul.f32 %v881, 1.442695
    %v895 = vpow.pop %v894
    %v896 = vmul.f32 %v882, 1.442695
    %v897 = vpow.pop %v896
    %v898 = vmul.f32 %v883, 1.442695
    %v899 = vpow.pop %v898
    %v900 = vsel %vm247, %v885, 0.0
    %901 = vadd.xlane.f32.xlu0 %v900
    %v902 = vpop.xlane.xlu0 %901
    %v903 = vsel %vm247, %v887, 0.0
    %904 = vadd.xlane.f32.xlu0 %v903
    %v905 = vpop.xlane.xlu0 %904
    %v906 = vsel %vm247, %v889, 0.0
    %907 = vadd.xlane.f32.xlu0 %v906
    %v908 = vpop.xlane.xlu0 %907
    %v909 = vsel %vm247, %v891, 0.0
    %910 = vadd.xlane.f32.xlu0 %v909
    %v911 = vpop.xlane.xlu0 %910
    %v912 = vsel %vm247, %v893, 0.0
    %913 = vadd.xlane.f32.xlu0 %v912
    %v914 = vpop.xlane.xlu0 %913
    %v915 = vsel %vm247, %v895, 0.0
    %916 = vadd.xlane.f32.xlu0 %v915
    %v917 = vpop.xlane.xlu0 %916
    %v918 = vsel %vm247, %v897, 0.0
    %919 = vadd.xlane.f32.xlu0 %v918
    %v920 = vpop.xlane.xlu0 %919
    %v921 = vsel %vm247, %v899, 0.0
    %922 = vadd.xlane.f32.xlu0 %v921
    %v923 = vpop.xlane.xlu0 %922
    %v924 = vrcp.pop %v902
    %v925 = vrcp.pop %v905
    %v926 = vrcp.pop %v908
    %v927 = vrcp.pop %v911
    %v928 = vrcp.pop %v914
    %v929 = vrcp.pop %v917
    %v930 = vrcp.pop %v920
    %v931 = vrcp.pop %v923
    %v932 = vmul.f32 %v885, %v924
    %v933 = vmul.f32 %v887, %v925
    %v934 = vmul.f32 %v889, %v926
    %v935 = vmul.f32 %v891, %v927
    %v936 = vmul.f32 %v893, %v928
    %v937 = vmul.f32 %v895, %v929
    %v938 = vmul.f32 %v897, %v930
    %v939 = vmul.f32 %v899, %v931
    %940 = vrot.lane.b32.xlu0 %v744, 64
    %v941 = vpop.permute.xlu0 %940
    %942 = vrot.lane.b32.xlu0 %v747, 64
    %v943 = vpop.permute.xlu0 %942
    %944 = vrot.lane.b32.xlu0 %v752, 64
    %v945 = vpop.permute.xlu0 %944
    %946 = vrot.lane.b32.xlu0 %v754, 64
    %v947 = vpop.permute.xlu0 %946
    %948 = vrot.lane.b32.xlu0 %v756, 64
    %v949 = vpop.permute.xlu0 %948
    %950 = vrot.lane.b32.xlu0 %v758, 64
    %v951 = vpop.permute.xlu0 %950
    %952 = vrot.lane.b32.xlu0 %v760, 64
    %v953 = vpop.permute.xlu0 %952
    %954 = vrot.lane.b32.xlu0 %v762, 64
    %v955 = vpop.permute.xlu0 %954
    %v965 = vsel %vm247, %v932, 0
    %v968 = vsel %vm247, %v933, 0
    %v971 = vsel %vm247, %v934, 0
    %v974 = vsel %vm247, %v935, 0
    %v977 = vsel %vm247, %v936, 0
    %v980 = vsel %vm247, %v937, 0
    %v983 = vsel %vm247, %v938, 0
    %v986 = vsel %vm247, %v939, 0
    %988 = vmatpush.msra.mxu0 0.0
    %989 = vmatpush.msra.mxu0 0.0
    %990 = vmatpush.msra.mxu0 0.0
    %991 = vmatpush.msra.mxu0 0.0
    %992 = vmatpush.msra.mxu0 0.0
    %993 = vmatpush.msra.mxu0 0.0
    %994 = vmatpush.msra.mxu0 0.0
    %995 = vmatpush.msra.mxu0 0.0
    %996 = vmatpush.msra.mxu0 %v955
    %997 = vmatpush.msra.mxu0 %v953
    %998 = vmatpush.msra.mxu0 %v951
    %999 = vmatpush.msra.mxu0 %v949
    %1000 = vmatpush.msra.mxu0 %v947
    %1001 = vmatpush.msra.mxu0 %v945
    %1002 = vmatpush.msra.mxu0 %v943
    %1003 = vmatpush.msra.mxu0 %v941
    %1004 = vmatmul.f32.gmra.mxu0 %v965
    %v1005 = vpop.f32.mrf.mxu0
    %v1006 = vadd.f32 0.0, %v1005
    %1007 = vmatmul.f32.gmra.mxu0 %v968
    %v1008 = vpop.f32.mrf.mxu0
    %v1009 = vadd.f32 0.0, %v1008
    %1010 = vmatmul.f32.gmra.mxu0 %v971
    %v1011 = vpop.f32.mrf.mxu0
    %v1012 = vadd.f32 0.0, %v1011
    %1013 = vmatmul.f32.gmra.mxu0 %v974
    %v1014 = vpop.f32.mrf.mxu0
    %v1015 = vadd.f32 0.0, %v1014
    %1016 = vmatmul.f32.gmra.mxu0 %v977
    %v1017 = vpop.f32.mrf.mxu0
    %v1018 = vadd.f32 0.0, %v1017
    %1019 = vmatmul.f32.gmra.mxu0 %v980
    %v1020 = vpop.f32.mrf.mxu0
    %v1021 = vadd.f32 0.0, %v1020
    %1022 = vmatmul.f32.gmra.mxu0 %v983
    %v1023 = vpop.f32.mrf.mxu0
    %v1024 = vadd.f32 0.0, %v1023
    %1025 = vmatmul.f32.gmra.mxu0 %v986
    %v1026 = vpop.f32.mrf.mxu0
    %v1027 = vadd.f32 0.0, %v1026
    %1028 = vdwg.mxu0
    %1031 = vrot.lane.b32.xlu0 %v1012, 8
    %v1032 = vpop.permute.xlu0 %1031
    %1033 = vrot.lane.b32.xlu0 %v1015, 8
    %v1034 = vpop.permute.xlu0 %1033
    %1039 = vrot.lane.b32.xlu0 %v1018, 16
    %v1040 = vpop.permute.xlu0 %1039
    %1041 = vrot.lane.b32.xlu0 %v1021, 16
    %v1042 = vpop.permute.xlu0 %1041
    %1047 = vrot.lane.b32.xlu0 %v1024, 24
    %v1048 = vpop.permute.xlu0 %1047
    %1049 = vrot.lane.b32.xlu0 %v1027, 24
    %v1050 = vpop.permute.xlu0 %1049
    %v1053 = vsel %vm173, %v1006, %v1032
    %v1054 = vsel %vm173, %v1009, %v1034
    %v1055 = vsel %vm451, %v1053, %v1040
    %v1056 = vsel %vm451, %v1054, %v1042
    %v1057 = vsel %vm454, %v1055, %v1048
    %v1058 = vsel %vm454, %v1056, %v1050
    %1063 = vrot.lane.b32.xlu0 %v702, 32
    %v1064 = vpop.permute.xlu0 %1063
    %1065 = vrot.lane.b32.xlu0 %v703, 32
    %v1066 = vpop.permute.xlu0 %1065
    %1067 = vrot.lane.b32.xlu0 %v704, 32
    %v1068 = vpop.permute.xlu0 %1067
    %1069 = vrot.lane.b32.xlu0 %v705, 32
    %v1070 = vpop.permute.xlu0 %1069
    %1076 = vrot.lane.b32.xlu0 %v719, 32
    %v1077 = vpop.permute.xlu0 %1076
    %v1080 = vsel %vm33, %v1057, 0
    %v1083 = vsel %vm33, %v1058, 0
    %1085 = vmatpush.msra.mxu0 0.0
    %1086 = vmatpush.msra.mxu0 0.0
    %1087 = vmatpush.msra.mxu0 0.0
    %1088 = vmatpush.msra.mxu0 0.0
    %1089 = vmatpush.msra.mxu0 0.0
    %1090 = vmatpush.msra.mxu0 0.0
    %1091 = vmatpush.msra.mxu0 0.0
    %1092 = vmatpush.msra.mxu0 0.0
    %1093 = vmatpush.msra.mxu0 0.0
    %1094 = vmatpush.msra.mxu0 0.0
    %1095 = vmatpush.msra.mxu0 0.0
    %1096 = vmatpush.msra.mxu0 0.0
    %1097 = vmatpush.msra.mxu0 %v1070
    %1098 = vmatpush.msra.mxu0 %v1068
    %1099 = vmatpush.msra.mxu0 %v1066
    %1100 = vmatpush.msra.mxu0 %v1064
    %1101 = vmatmul.f32.gmra.mxu0 %v1080
    %v1102 = vpop.f32.mrf.mxu0
    %v1103 = vadd.f32 %v1077, %v1102
    %1104 = vmatmul.f32.gmra.mxu0 %v1083
    %v1105 = vpop.f32.mrf.mxu0
    %v1106 = vadd.f32 %v1077, %v1105
    %1107 = vdwg.mxu0
    %v1108 = vadd.f32 %v696, %v1103
    %v1109 = vadd.f32 %v697, %v1106
    %v1110 = vsel %vm33, %v1108, 0.0
    %1111 = vadd.xlane.f32.xlu0 %v1110
    %v1112 = vpop.xlane.xlu0 %1111
    %v1113 = vsel %vm33, %v1109, 0.0
    %1114 = vadd.xlane.f32.xlu0 %v1113
    %v1115 = vpop.xlane.xlu0 %1114
    %v1116 = vmul.f32 %v1112, %v46
    %v1117 = vmul.f32 %v1115, %v46
    %v1118 = vsub.f32 %v1108, %v1116
    %v1119 = vsub.f32 %v1109, %v1117
    %v1120 = vmul.f32 %v1118, %v1118
    %v1121 = vmul.f32 %v1119, %v1119
    %v1122 = vsel %vm33, %v1120, 0.0
    %1123 = vadd.xlane.f32.xlu0 %v1122
    %v1124 = vpop.xlane.xlu0 %1123
    %v1125 = vsel %vm33, %v1121, 0.0
    %1126 = vadd.xlane.f32.xlu0 %v1125
    %v1127 = vpop.xlane.xlu0 %1126
    %v1128 = vmul.f32 %v1124, %v46
    %v1129 = vmul.f32 %v1127, %v46
    %v1130 = vadd.f32 %v1128, 1e-12
    %v1131 = vadd.f32 %v1129, 1e-12
    %v1132 = vrsqrt.pop %v1130
    %v1133 = vmul.f32 %v1132, %v1130
    %v1134 = vmul.f32 %v1133, %v1132
    %v1135 = vmul.f32 0.5, %v1134
    %v1136 = vsub.f32 1.5, %v1135
    %v1137 = vmul.f32 %v1132, %v1136
    %vm1138 = vweird.f32 %v1130
    %vm1139 = vweird.f32 %v1132
    %vm1140 = vmor %vm1138, %vm1139
    %v1141 = vsel %vm1140, %v1132, %v1137
    %v1142 = vrsqrt.pop %v1131
    %v1143 = vmul.f32 %v1142, %v1131
    %v1144 = vmul.f32 %v1143, %v1142
    %v1145 = vmul.f32 0.5, %v1144
    %v1146 = vsub.f32 1.5, %v1145
    %v1147 = vmul.f32 %v1142, %v1146
    %vm1148 = vweird.f32 %v1131
    %vm1149 = vweird.f32 %v1142
    %vm1150 = vmor %vm1148, %vm1149
    %v1151 = vsel %vm1150, %v1142, %v1147
    %v1152 = vmul.f32 %v1118, %v1141
    %v1153 = vmul.f32 %v1119, %v1151
    %v1154 = vperm.slane %v700, 0
    %v1155 = vmul.f32 %v1152, %v1154
    %v1156 = vmul.f32 %v1153, %v1154
    %1158 = vrot.lane.b32.xlu0 %v1154, 96
    %v1159 = vpop.permute.xlu0 %1158
    %v1161 = vadd.f32 %v1155, %v1159
    %v1162 = vadd.f32 %v1156, %v1159
    %v1163 = vperm.slane %v699, 0
    %v1165 = vsel %vm33, %v1161, 0
    %v1168 = vsel %vm33, %v1162, 0
    %1170 = vmatpush.msra.mxu0 0.0
    %1171 = vmatpush.msra.mxu0 0.0
    %1172 = vmatpush.msra.mxu0 0.0
    %1173 = vmatpush.msra.mxu0 0.0
    %1174 = vmatpush.msra.mxu0 0.0
    %1175 = vmatpush.msra.mxu0 0.0
    %1176 = vmatpush.msra.mxu0 0.0
    %1177 = vmatpush.msra.mxu0 0.0
    %1178 = vmatpush.msra.mxu0 0.0
    %1179 = vmatpush.msra.mxu0 0.0
    %1180 = vmatpush.msra.mxu0 0.0
    %1181 = vmatpush.msra.mxu0 0.0
    %1182 = vmatpush.msra.mxu0 %v710
    %1183 = vmatpush.msra.mxu0 %v709
    %1184 = vmatpush.msra.mxu0 %v708
    %1185 = vmatpush.msra.mxu0 %v707
    %1186 = vmatmul.f32.gmra.mxu0 %v1165
    %v1187 = vpop.f32.mrf.mxu0
    %v1188 = vadd.f32 %v1163, %v1187
    %1189 = vmatmul.f32.gmra.mxu0 %v1168
    %v1190 = vpop.f32.mrf.mxu0
    %v1191 = vadd.f32 %v1163, %v1190
    %1192 = vdwg.mxu0
    %v1193 = vmul.f32 %v1188, %v1188
    %v1194 = vmul.f32 %v1191, %v1191
    %v1195 = vmul.f32 %v1188, %v1193
    %v1196 = vmul.f32 %v1191, %v1194
    %v1197 = vmul.f32 %v1195, 0.044715
    %v1198 = vmul.f32 %v1196, 0.044715
    %v1199 = vadd.f32 %v1188, %v1197
    %v1200 = vadd.f32 %v1191, %v1198
    %v1201 = vmul.f32 %v1199, 0.7978846
    %v1202 = vmul.f32 %v1200, 0.7978846
    %v1203 = vtanh.pop %v1201
    %v1204 = vtanh.pop %v1202
    %v1205 = vadd.f32 %v1203, 1.0
    %v1206 = vadd.f32 %v1204, 1.0
    %v1207 = vmul.f32 %v1205, 0.5
    %v1208 = vmul.f32 %v1206, 0.5
    %v1209 = vmul.f32 %v1188, %v1207
    %v1210 = vmul.f32 %v1191, %v1208
    %1212 = vrot.lane.b32.xlu0 %v1163, 64
    %v1213 = vpop.permute.xlu0 %1212
    %v1216 = vsel %vm247, %v1209, 0
    %v1219 = vsel %vm247, %v1210, 0
    %1221 = vmatpush.msra.mxu0 0.0
    %1222 = vmatpush.msra.mxu0 0.0
    %1223 = vmatpush.msra.mxu0 0.0
    %1224 = vmatpush.msra.mxu0 0.0
    %1225 = vmatpush.msra.mxu0 0.0
    %1226 = vmatpush.msra.mxu0 0.0
    %1227 = vmatpush.msra.mxu0 0.0
    %1228 = vmatpush.msra.mxu0 0.0
    %1229 = vmatpush.msra.mxu0 %v718
    %1230 = vmatpush.msra.mxu0 %v717
    %1231 = vmatpush.msra.mxu0 %v716
    %1232 = vmatpush.msra.mxu0 %v715
    %1233 = vmatpush.msra.mxu0 %v714
    %1234 = vmatpush.msra.mxu0 %v713
    %1235 = vmatpush.msra.mxu0 %v712
    %1236 = vmatpush.msra.mxu0 %v711
    %1237 = vmatmul.f32.gmra.mxu0 %v1216
    %v1238 = vpop.f32.mrf.mxu0
    %v1239 = vadd.f32 %v1213, %v1238
    %1240 = vmatmul.f32.gmra.mxu0 %v1219
    %v1241 = vpop.f32.mrf.mxu0
    %v1242 = vadd.f32 %v1213, %v1241
    %1243 = vdwg.mxu0
    %v1244 = vadd.f32 %v1161, %v1239
    %v1245 = vadd.f32 %v1162, %v1242
    %v1246 = vsel %vm33, %v1244, 0.0
    %1247 = vadd.xlane.f32.xlu0 %v1246
    %v1248 = vpop.xlane.xlu0 %1247
    %v1249 = vsel %vm33, %v1245, 0.0
    %1250 = vadd.xlane.f32.xlu0 %v1249
    %v1251 = vpop.xlane.xlu0 %1250
    %v1252 = vmul.f32 %v1248, %v46
    %v1253 = vmul.f32 %v1251, %v46
    %v1254 = vsub.f32 %v1244, %v1252
    %v1255 = vsub.f32 %v1245, %v1253
    %v1256 = vmul.f32 %v1254, %v1254
    %v1257 = vmul.f32 %v1255, %v1255
    %v1258 = vsel %vm33, %v1256, 0.0
    %1259 = vadd.xlane.f32.xlu0 %v1258
    %v1260 = vpop.xlane.xlu0 %1259
    %v1261 = vsel %vm33, %v1257, 0.0
    %1262 = vadd.xlane.f32.xlu0 %v1261
    %v1263 = vpop.xlane.xlu0 %1262
    %v1264 = vmul.f32 %v1260, %v46
    %v1265 = vmul.f32 %v1263, %v46
    %v1266 = vadd.f32 %v1264, 1e-12
    %v1267 = vadd.f32 %v1265, 1e-12
    %v1268 = vrsqrt.pop %v1266
    %v1269 = vmul.f32 %v1268, %v1266
    %v1270 = vmul.f32 %v1269, %v1268
    %v1271 = vmul.f32 0.5, %v1270
    %v1272 = vsub.f32 1.5, %v1271
    %v1273 = vmul.f32 %v1268, %v1272
    %vm1274 = vweird.f32 %v1266
    %vm1275 = vweird.f32 %v1268
    %vm1276 = vmor %vm1274, %vm1275
    %v1277 = vsel %vm1276, %v1268, %v1273
    %v1278 = vrsqrt.pop %v1267
    %v1279 = vmul.f32 %v1278, %v1267
    %v1280 = vmul.f32 %v1279, %v1278
    %v1281 = vmul.f32 0.5, %v1280
    %v1282 = vsub.f32 1.5, %v1281
    %v1283 = vmul.f32 %v1278, %v1282
    %vm1284 = vweird.f32 %v1267
    %vm1285 = vweird.f32 %v1278
    %vm1286 = vmor %vm1284, %vm1285
    %v1287 = vsel %vm1286, %v1278, %v1283
    %v1288 = vmul.f32 %v1254, %v1277
    %v1289 = vmul.f32 %v1255, %v1287
    %1290 = vrot.lane.b32.xlu0 %v1154, 64
    %v1291 = vpop.permute.xlu0 %1290
    %v1293 = vmul.f32 %v1288, %v1291
    %v1294 = vmul.f32 %v1289, %v1291
    %1295 = vrot.lane.b32.xlu0 %v1154, 32
    %v1296 = vpop.permute.xlu0 %1295
    %v1298 = vadd.f32 %v1293, %v1296
    %v1299 = vadd.f32 %v1294, %v1296
    %v1301 = vsel %vm451, %v31, 0
    %1303 = vmatpush.msra.mxu0 0.0
    %1304 = vmatpush.msra.mxu0 0.0
    %1305 = vmatpush.msra.mxu0 0.0
    %1306 = vmatpush.msra.mxu0 0.0
    %1307 = vmatpush.msra.mxu0 0.0
    %1308 = vmatpush.msra.mxu0 0.0
    %1309 = vmatpush.msra.mxu0 0.0
    %1310 = vmatpush.msra.mxu0 0.0
    %1311 = vmatpush.msra.mxu0 0.0
    %1312 = vmatpush.msra.mxu0 0.0
    %1313 = vmatpush.msra.mxu0 0.0
    %1314 = vmatpush.msra.mxu0 0.0
    %1315 = vmatpush.msra.mxu0 0.0
    %1316 = vmatpush.msra.mxu0 0.0
    %1317 = vmatpush.msra.mxu0 %v1299
    %1318 = vmatpush.msra.mxu0 %v1298
    %1319 = vmatmul.f32.gmra.mxu0 %v1301
    %v1320 = vpop.f32.mrf.mxu0
    %v1321 = vadd.f32 0.0, %v1320
    %1322 = vdwg.mxu0
    %vm1323 = vcmask 123904
    %v1324 = vsel %vm1323, %v31, 0.0
    %1325 = vadd.xlane.f32.xlu0 %v1324
    %v1326 = vpop.xlane.xlu0 %1325
    %v1327 = vmax.f32 %v1326, 1e-09
    %v1328 = vrcp.pop %v1327
    %v1329 = vmul.f32 %v1327, %v1328
    %v1330 = vsub.f32 1.0, %v1329
    %v1331 = vmul.f32 %v1328, %v1330
    %v1332 = vadd.f32 %v1328, %v1331
    %vm1333 = vweird.f32 %v1327
    %vm1334 = vweird.f32 %v1328
    %vm1335 = vmor %vm1333, %vm1334
    %v1336 = vsel %vm1335, %v1328, %v1332
    %v1337 = vand.u32 2147483647, %v1327
    %vm1338 = vcmp.eq.f32.partialorder %v1337, 8.507059e+37
    %v1339 = vand.u32 %v1327, 2147483648
    %v1340 = vor.u32 1.1754944e-38, %v1339
    %v1341 = vsel %vm1338, %v1340, %v1336
    %v1342 = vmul.f32 %v1321, %v1341
    %v1343 = vmul.f32 %v1342, %v1342
    %vm1344 = vcmask 254976
    %v1345 = vsel %vm1344, %v1343, 0.0
    %1346 = vadd.xlane.f32.xlu0 %v1345
    %v1347 = vpop.xlane.xlu0 %1346
    %v1348 = vrsqrt.pop %v1347
    %v1349 = vmul.f32 %v1348, %v1347
    %v1350 = vmul.f32 %v1349, %v1348
    %v1351 = vmul.f32 0.5, %v1350
    %v1352 = vsub.f32 1.5, %v1351
    %v1353 = vmul.f32 %v1348, %v1352
    %v1354 = vmul.f32 %v1347, %v1353
    %vm1355 = vcmp.eq.f32.partialorder %v1347, inf
    %v1356 = vsel %vm1355, %v1347, %v1354
    %vm1357 = vcmp.eq.f32.partialorder %v1347, 0.0
    %v1358 = vand.u32 %v1347, 2147483648
    %v1359 = vsel %vm1357, %v1358, %v1356
    %v1360 = vmax.f32 %v1359, 1e-12
    %v1361 = vrcp.pop %v1360
    %v1362 = vmul.f32 %v1360, %v1361
    %v1363 = vsub.f32 1.0, %v1362
    %v1364 = vmul.f32 %v1361, %v1363
    %v1365 = vadd.f32 %v1361, %v1364
    %vm1366 = vweird.f32 %v1360
    %vm1367 = vweird.f32 %v1361
    %vm1368 = vmor %vm1366, %vm1367
    %v1369 = vsel %vm1368, %v1361, %v1365
    %v1370 = vand.u32 2147483647, %v1360
    %vm1371 = vcmp.eq.f32.partialorder %v1370, 8.507059e+37
    %v1372 = vand.u32 %v1360, 2147483648
    %v1373 = vor.u32 1.1754944e-38, %v1372
    %v1374 = vsel %vm1371, %v1373, %v1369
    %v1375 = vmul.f32 %v1342, %v1374
    %1376 = vst.msk [vmem:[#allocation2] sm:$0x3] %vm1344, %v1375
    %v1377 = vld [vmem:[%s0 + $0x58] sm:$0x3]
    %v1378 = vsub.f32 %v1375, %v1377
    %v1379 = vmul.f32 %v1378, %v1378
    %v1380 = vsel %vm1344, %v1379, 0.0
    %1381 = vadd.xlane.f32.xlu0 %v1380
    %v1382 = vpop.xlane.xlu0 %1381
    %vm1383 = vcmask 1041408
    %v1384 = vsel %vm1383, %v1382, 0.0
    %v1385 = vrot.slane %v1384, 4
    %v1386 = vadd.f32 %v1384, %v1385
    %v1387 = vrot.slane %v1386, 2
    %v1388 = vadd.f32 %v1386, %v1387
    %v1389 = vrot.slane %v1388, 1
    %v1390 = vadd.f32 %v1388, %v1389
    %v1391 = vmul.f32 %v1390, 0.015625
    %vm1392 = vcmask 0
    %1393 = vst.msk [vmem:[#allocation4] sm:$0x1] %vm1392, %v1391
    // Predicated region
    $region18: #{tpu_custom_call.1} parent=1 // pred_check
      _
    $region19: #{tpu_custom_call.1} parent=1 // pred_check_branch
      %1395 = sbr.rel (0) target = $region21
    $region20: #{tpu_custom_call.1} parent=1 // pred_region
      %1397 = vsyncadd [#allocation3], 0
      %s1399 = sshll.u32 [#allocation2], 4
      %s1400 = int_to_ptr.vmem [resolvable:$true] %s1399
      %s1401 = sshll.u32 %s4, 4
      %s1402 = int_to_ptr.hbm [resolvable:$true] %s1401
      %1404 = dma.vmem_to_hbm [thread:$0]  %s1400, 32, %s1402, [#allocation3]
    $region21: #{tpu_custom_call.1} parent=1 // pred_fallthru
      _
    // Predicated region
    $region22: #{tpu_custom_call.1} parent=1 // pred_check
      _
    $region23: #{tpu_custom_call.1} parent=1 // pred_check_branch
      %1406 = sbr.rel (0) target = $region25
    $region24: #{tpu_custom_call.1} parent=1 // pred_region
      %1408 = vsyncadd [#allocation5], 0
      %s1410 = sshll.u32 [#allocation4], 4
      %s1411 = int_to_ptr.vmem [resolvable:$true] %s1410
      %s1412 = sshll.u32 %s5, 4
      %s1413 = int_to_ptr.hbm [resolvable:$true] %s1412
      %1415 = dma.vmem_to_hbm [thread:$0]  %s1411, 16, %s1413, [#allocation5]
    $region25: #{tpu_custom_call.1} parent=1 // pred_fallthru
      _
    // Predicated region
    $region26: #{tpu_custom_call.1} parent=1 // pred_check
      _
    $region27: #{tpu_custom_call.1} parent=1 // pred_check_branch
      %1417 = sbr.rel (0) target = $region29
    $region28: #{tpu_custom_call.1} parent=1 // pred_region
      %1419 = dma.done [#allocation3], 32
    $region29: #{tpu_custom_call.1} parent=1 // pred_fallthru
      _
    // Predicated region
    $region30: #{tpu_custom_call.1} parent=1 // pred_check
      _
    $region31: #{tpu_custom_call.1} parent=1 // pred_check_branch
      %1421 = sbr.rel (0) target = $region33
    $region32: #{tpu_custom_call.1} parent=1 // pred_region
      %1423 = dma.done [#allocation5], 16
    $region33: #{tpu_custom_call.1} parent=1 // pred_fallthru
      _
    %1424 = vsyncpa [#allocation3], 1
    %1425 = vsyncpa [#allocation5], 1

</llo_original>
